<compile_context>
chip_gen: v5e
topology: v5e:2x2
jax: 0.10.0
libtpu: 0.0.40
codegen_flags: <defaults>
</compile_context>

<pallas_src>
import math

import jax
import jax.numpy as jnp
from jax.experimental import pallas as pl
from jax.experimental.pallas import tpu as pltpu

# ---------------- model configuration (small synthetic "mini-BERT") ----------------
B = 2            # batch
S = 8            # sequence length
H = 32           # hidden size  (bert.config.hidden_size)
NUM_HEADS = 2
HEAD_DIM = H // NUM_HEADS
FFN = 4 * H      # 128, BERT intermediate size
NUM_LAYERS = 2
NUM_LABELS = 8   # num_labels for the NER classifier
VOCAB = 100
LN_EPS = 1e-12   # BERT LayerNorm eps
BS = B * S       # flattened token count
LANE = 128       # lane-dense padding width
TRANS_B = (((1,), (1,)), ((), ()))   # q @ k^T dimension numbers


def _layernorm(x, g, b):
    mu = jnp.mean(x, axis=-1, keepdims=True)
    var = jnp.mean((x - mu) ** 2, axis=-1, keepdims=True)
    return (x - mu) * jax.lax.rsqrt(var + LN_EPS) * g + b


# ---------------------------- fused Pallas kernel ----------------------------
def fused_ner_kernel(x_ref, bias_ref, labels_ref, w1_ref, w2_ref, vec_ref, gvec_ref,
                     logits_ref, loss_ref):
    """Embedding-LN -> NUM_LAYERS encoder layers -> classifier -> CE loss, all on-chip."""
    gvec = gvec_ref[...]                                                  # (8, 128) f32
    bias2d = bias_ref[...]                                                # (BS, BS) f32

    # embedding LayerNorm (glue folded into the kernel)
    x = _layernorm(x_ref[...], gvec[0:1, 0:H], gvec[1:2, 0:H])            # (BS, H) f32

    # encoder layers, statically unrolled; x never leaves on-chip memory
    for l in range(NUM_LAYERS):
        w1 = w1_ref[l]                                                    # (H, 256) bf16
        w2 = w2_ref[l]                                                    # (FFN+H, H) bf16
        vec = vec_ref[l]                                                  # (8, 128) f32

        # single packed QKV projection (Q columns pre-scaled by 1/sqrt(HEAD_DIM));
        # lane-dense (BS, 128) result, real data in cols 0:3H
        qkv = jnp.dot(x.astype(jnp.bfloat16), w1[:, 0:LANE],
                      preferred_element_type=jnp.float32) + vec[0:1, :]   # (BS, 128)

        # multi-head attention: pure 2-D matmuls, block-diagonal additive mask
        attn = None
        for h in range(NUM_HEADS):
            lo = h * HEAD_DIM
            qh = qkv[:, lo:lo + HEAD_DIM].astype(jnp.bfloat16)            # (BS, Dh)
            kh = qkv[:, H + lo:H + lo + HEAD_DIM].astype(jnp.bfloat16)
            vh = qkv[:, 2 * H + lo:2 * H + lo + HEAD_DIM].astype(jnp.bfloat16)

            s = jax.lax.dot_general(qh, kh, TRANS_B,
                                    preferred_element_type=jnp.float32) + bias2d  # (BS, BS)
            s = s - jnp.max(s, axis=-1, keepdims=True)
            p = jnp.exp(s)
            p = p * pl.reciprocal(jnp.sum(p, axis=-1, keepdims=True), approx=True)

            ctx = jnp.dot(p.astype(jnp.bfloat16), vh,
                          preferred_element_type=jnp.float32)             # (BS, Dh)
            # per-head slice of the output projection (rows FFN.. of W2) -> no concat
            contrib = jnp.dot(ctx.astype(jnp.bfloat16),
                              w2[FFN + lo:FFN + lo + HEAD_DIM, :],
                              preferred_element_type=jnp.float32)         # (BS, H)
            attn = contrib if attn is None else attn + contrib
        attn = attn + vec[2:3, 0:H]                                       # + b_o

        h1 = _layernorm(x + attn, vec[3:4, 0:H], vec[4:5, 0:H])

        # feed-forward (single 2-D matmuls on flattened tokens)
        ff = jnp.dot(h1.astype(jnp.bfloat16), w1[:, LANE:2 * LANE],
                     preferred_element_type=jnp.float32) + vec[1:2, :]    # (BS, FFN)
        ff = jax.nn.gelu(ff, approximate=True)
        ff2 = jnp.dot(ff.astype(jnp.bfloat16), w2[0:FFN, :],
                      preferred_element_type=jnp.float32) + vec[5:6, 0:H]  # (BS, H)

        x = _layernorm(h1 + ff2, vec[6:7, 0:H], vec[7:8, 0:H])

    # dropout(sequence_output) -> identity at inference
    # classifier (lane-dense padded logits) + CrossEntropyLoss(ignore_index=-100, mean)
    wc = w1_ref[NUM_LAYERS][:, 0:LANE]                                    # (H, 128) bf16
    logits = jnp.dot(x.astype(jnp.bfloat16), wc,
                     preferred_element_type=jnp.float32) + gvec[2:3, :]   # (BS, 128)
    logits_ref[...] = logits                                              # unmasked vst

    labels = labels_ref[...]                                              # (BS, 1) int32
    m = jnp.max(logits, axis=-1, keepdims=True)
    lse = jnp.log(jnp.sum(jnp.exp(logits - m), axis=-1, keepdims=True)) + m
    logp = logits - lse                                                   # padded cols -> -1e9ish, never picked

    valid = labels != -100
    lbl = jnp.where(valid, labels, 0)                                     # (BS, 1)
    iota = jax.lax.broadcasted_iota(jnp.int32, logits.shape, 1)
    onehot = (iota == lbl).astype(jnp.float32)
    picked = jnp.sum(logp * onehot, axis=-1, keepdims=True)               # (BS, 1)

    validf = valid.astype(jnp.float32)
    total = jnp.sum(-picked * validf, axis=0, keepdims=True)              # (1, 1)
    # NOTE: clamp keeps the all-ignored edge case finite (PyTorch would return NaN there)
    count = jnp.maximum(jnp.sum(validf, axis=0, keepdims=True), 1.0)      # (1, 1)
    loss_ref[...] = total / count


# ---------------------------- pallas_call wrapper ----------------------------
def _vmem_spec():
    return pl.BlockSpec(memory_space=pltpu.MemorySpace.VMEM)


def run_fused_ner(x2, bias2d, labels2, params):
    args = [x2, bias2d, labels2,
            params['W1'], params['W2'], params['vec'], params['gvec']]
    return pl.pallas_call(
        fused_ner_kernel,
        out_shape=(jax.ShapeDtypeStruct((BS, LANE), jnp.float32),   # lane-dense logits
                   jax.ShapeDtypeStruct((1, 1), jnp.float32)),      # loss (VMEM resident)
        in_specs=[_vmem_spec() for _ in args],
        out_specs=(_vmem_spec(), _vmem_spec()),
    )(*args)


# ---------------------------- parameters & forward ----------------------------
def init_params(key):
    keys = jax.random.split(key, 16)
    it = iter(keys)

    def norm(shape, scale=0.02):
        return scale * jax.random.normal(next(it), shape, dtype=jnp.float32)

    q_scale = 1.0 / math.sqrt(HEAD_DIM)

    # raw per-layer weights
    w_q = norm((NUM_LAYERS, H, H)) * q_scale        # scale folded into Q columns
    w_k = norm((NUM_LAYERS, H, H))
    w_v = norm((NUM_LAYERS, H, H))
    w_o = norm((NUM_LAYERS, H, H))
    w_f1 = norm((NUM_LAYERS, H, FFN))
    w_f2 = norm((NUM_LAYERS, FFN, H))
    w_c = norm((H, NUM_LABELS))

    # ---- W1 slab: (L+1, H, 256) bf16 : [QKV(96)+pad(32) | FFN-in(128)], classifier last
    qkv = jnp.concatenate([w_q, w_k, w_v], axis=-1)                       # (L, H, 96)
    qkv_pad = jnp.pad(qkv, ((0, 0), (0, 0), (0, LANE - 3 * H)))           # (L, H, 128)
    w1_layers = jnp.concatenate([qkv_pad, w_f1], axis=-1)                 # (L, H, 256)
    wc_pad = jnp.pad(w_c, ((0, 0), (0, LANE - NUM_LABELS)))               # (H, 128)
    wc_slab = jnp.pad(wc_pad[None], ((0, 0), (0, 0), (0, LANE)))          # (1, H, 256)
    W1 = jnp.concatenate([w1_layers, wc_slab], axis=0).astype(jnp.bfloat16)

    # ---- W2 slab: (L, FFN+H, H) bf16 : [FFN-out rows 0:128 | attn out-proj rows 128:160]
    W2 = jnp.concatenate([w_f2, w_o], axis=1).astype(jnp.bfloat16)

    # ---- per-layer f32 vec slab: (L, 8, 128)
    def padH(v):                                                          # (L, H) -> (L, 128)
        return jnp.pad(v, ((0, 0), (0, LANE - H)))

    b_qkv = jnp.zeros((NUM_LAYERS, LANE), jnp.float32)   # Q part would be pre-scaled (zeros here)
    b_f1 = jnp.zeros((NUM_LAYERS, FFN), jnp.float32)
    b_o = padH(jnp.zeros((NUM_LAYERS, H), jnp.float32))
    ln1_g = padH(jnp.ones((NUM_LAYERS, H), jnp.float32))
    ln1_b = padH(jnp.zeros((NUM_LAYERS, H), jnp.float32))
    b_f2 = padH(jnp.zeros((NUM_LAYERS, H), jnp.float32))
    ln2_g = padH(jnp.ones((NUM_LAYERS, H), jnp.float32))
    ln2_b = padH(jnp.zeros((NUM_LAYERS, H), jnp.float32))
    vec = jnp.stack([b_qkv, b_f1, b_o, ln1_g, ln1_b, b_f2, ln2_g, ln2_b], axis=1)  # (L, 8, 128)

    # ---- global f32 vec slab: (8, 128) : emb_ln gamma/beta, padded classifier bias
    emb_g = jnp.pad(jnp.ones((H,), jnp.float32), (0, LANE - H))
    emb_b = jnp.zeros((LANE,), jnp.float32)
    b_c = jnp.concatenate([jnp.zeros((NUM_LABELS,), jnp.float32),
                           jnp.full((LANE - NUM_LABELS,), -1e9, jnp.float32)])
    gvec = jnp.stack([emb_g, emb_b, b_c] + [jnp.zeros((LANE,), jnp.float32)] * 5)  # (8, 128)

    params = {
        'word_emb': norm((VOCAB, H)),
        'pos_emb': norm((S, H)),
        'type_emb': norm((2, H)),
        'W1': W1, 'W2': W2, 'vec': vec, 'gvec': gvec,
    }
    return params


def ner_forward(params, input_ids, attention_mask, labels):
    # glue: embedding lookup (gather) + positional/type add, flattened to (B*S, H)
    x = params['word_emb'][input_ids]                          # (B, S, H)
    x = x + params['pos_emb'][None, :, :]
    x = x + params['type_emb'][0][None, None, :]
    x2 = x.reshape(BS, H)

    # glue: block-diagonal additive attention bias (masks cross-batch pairs & padded keys)
    batch_idx = jnp.arange(BS, dtype=jnp.int32) // S
    same = batch_idx[:, None] == batch_idx[None, :]
    key_ok = (attention_mask.reshape(BS) != 0)[None, :]
    bias2d = jnp.where(same & key_ok, 0.0, -1e9).astype(jnp.float32)      # (BS, BS)

    labels2 = labels.reshape(BS, 1).astype(jnp.int32)

    logits_pad, loss = run_fused_ner(x2, bias2d, labels2, params)
    logits = logits_pad[:, :NUM_LABELS].reshape(B, S, NUM_LABELS)
    return loss[0, 0], logits


if __name__ == "__main__":
    key = jax.random.PRNGKey(0)
    pkey, ikey, lkey = jax.random.split(key, 3)

    params = init_params(pkey)
    input_ids = jax.random.randint(ikey, (B, S), 0, VOCAB, dtype=jnp.int32)
    attention_mask = jnp.ones((B, S), jnp.int32).at[1, 6:].set(0)     # pad tail of batch 1
    labels = jax.random.randint(lkey, (B, S), 0, NUM_LABELS, dtype=jnp.int32)
    labels = jnp.where(attention_mask == 1, labels, -100)             # ignore padded tokens

    fwd = jax.jit(ner_forward)
    loss, logits = fwd(params, input_ids, attention_mask, labels)
    jax.block_until_ready((loss, logits))

    assert logits.shape == (B, S, NUM_LABELS)
    assert logits.dtype == jnp.float32
    assert bool(jnp.isfinite(loss))
    print("KERNEL_OK")
</pallas_src>

<mosaic_0001>
module attributes {stable_mosaic.version = 11 : i64} {
  func.func @fused_ner_kernel(%arg0: memref<16x32xf32, #tpu.memory_space<vmem>>, %arg1: memref<16x16xf32, #tpu.memory_space<vmem>>, %arg2: memref<16x1xi32, #tpu.memory_space<vmem>>, %arg3: memref<3x32x256xbf16, #tpu.memory_space<vmem>>, %arg4: memref<2x160x32xbf16, #tpu.memory_space<vmem>>, %arg5: memref<2x8x128xf32, #tpu.memory_space<vmem>>, %arg6: memref<8x128xf32, #tpu.memory_space<vmem>>, %arg7: memref<16x128xf32, #tpu.memory_space<vmem>>, %arg8: memref<1x1xf32, #tpu.memory_space<vmem>>) attributes {dimension_semantics = [], scalar_prefetch = 0 : i64, scratch_operands = 0 : i64, tpu.core_type = #tpu.core_type<tc>} {
    %c0 = arith.constant 0 : index
    %c0_0 = arith.constant 0 : index
    %0 = vector.load %arg6[%c0, %c0_0] : memref<8x128xf32, #tpu.memory_space<vmem>>, vector<8x128xf32>
    %c0_1 = arith.constant 0 : index
    %c0_2 = arith.constant 0 : index
    %1 = vector.load %arg1[%c0_1, %c0_2] : memref<16x16xf32, #tpu.memory_space<vmem>>, vector<16x16xf32>
    %c0_3 = arith.constant 0 : index
    %c0_4 = arith.constant 0 : index
    %2 = vector.load %arg0[%c0_3, %c0_4] : memref<16x32xf32, #tpu.memory_space<vmem>>, vector<16x32xf32>
    %3 = vector.extract_strided_slice %0 {offsets = [0, 0], sizes = [1, 32], strides = [1, 1]} : vector<8x128xf32> to vector<1x32xf32>
    %4 = vector.extract_strided_slice %0 {offsets = [1, 0], sizes = [1, 32], strides = [1, 1]} : vector<8x128xf32> to vector<1x32xf32>
    %cst = arith.constant dense<0.000000e+00> : vector<16xf32>
    %5 = vector.multi_reduction <add>, %2, %cst [1] : vector<16x32xf32> to vector<16xf32>
    %6 = vector.shape_cast %5 : vector<16xf32> to vector<16x1xf32>
    %cst_5 = arith.constant 3.200000e+01 : f32
    %7 = vector.broadcast %cst_5 : f32 to vector<16x1xf32>
    %8 = arith.divf %6, %7 : vector<16x1xf32>
    %9 = vector.broadcast %8 : vector<16x1xf32> to vector<16x32xf32>
    %10 = arith.subf %2, %9 : vector<16x32xf32>
    %11 = arith.mulf %10, %10 : vector<16x32xf32>
    %cst_6 = arith.constant dense<0.000000e+00> : vector<16xf32>
    %12 = vector.multi_reduction <add>, %11, %cst_6 [1] : vector<16x32xf32> to vector<16xf32>
    %13 = vector.shape_cast %12 : vector<16xf32> to vector<16x1xf32>
    %cst_7 = arith.constant 3.200000e+01 : f32
    %14 = vector.broadcast %cst_7 : f32 to vector<16x1xf32>
    %15 = arith.divf %13, %14 : vector<16x1xf32>
    %16 = vector.broadcast %8 : vector<16x1xf32> to vector<16x32xf32>
    %17 = arith.subf %2, %16 : vector<16x32xf32>
    %cst_8 = arith.constant 9.99999996E-13 : f32
    %18 = vector.broadcast %cst_8 : f32 to vector<16x1xf32>
    %19 = arith.addf %15, %18 : vector<16x1xf32>
    %20 = math.rsqrt %19 : vector<16x1xf32>
    %21 = vector.broadcast %20 : vector<16x1xf32> to vector<16x32xf32>
    %22 = arith.mulf %17, %21 : vector<16x32xf32>
    %23 = vector.broadcast %3 : vector<1x32xf32> to vector<16x32xf32>
    %24 = arith.mulf %22, %23 : vector<16x32xf32>
    %25 = vector.broadcast %4 : vector<1x32xf32> to vector<16x32xf32>
    %26 = arith.addf %24, %25 : vector<16x32xf32>
    %c0_9 = arith.constant 0 : index
    %c0_10 = arith.constant 0 : index
    %c0_11 = arith.constant 0 : index
    %27 = vector.load %arg3[%c0_9, %c0_10, %c0_11] : memref<3x32x256xbf16, #tpu.memory_space<vmem>>, vector<1x32x256xbf16>
    %28 = vector.shape_cast %27 : vector<1x32x256xbf16> to vector<32x256xbf16>
    %c0_12 = arith.constant 0 : index
    %c0_13 = arith.constant 0 : index
    %c0_14 = arith.constant 0 : index
    %29 = vector.load %arg4[%c0_12, %c0_13, %c0_14] : memref<2x160x32xbf16, #tpu.memory_space<vmem>>, vector<1x160x32xbf16>
    %30 = vector.shape_cast %29 : vector<1x160x32xbf16> to vector<160x32xbf16>
    %c0_15 = arith.constant 0 : index
    %c0_16 = arith.constant 0 : index
    %c0_17 = arith.constant 0 : index
    %31 = vector.load %arg5[%c0_15, %c0_16, %c0_17] : memref<2x8x128xf32, #tpu.memory_space<vmem>>, vector<1x8x128xf32>
    %32 = vector.shape_cast %31 : vector<1x8x128xf32> to vector<8x128xf32>
    %33 = arith.truncf %26 : vector<16x32xf32> to vector<16x32xbf16>
    %34 = vector.extract_strided_slice %28 {offsets = [0, 0], sizes = [32, 128], strides = [1, 1]} : vector<32x256xbf16> to vector<32x128xbf16>
    %cst_18 = arith.constant dense<0.000000e+00> : vector<16x128xf32>
    %35 = tpu.matmul %33, %34, %cst_18 {dimension_numbers = #tpu.dot_dimension_numbers<[1], [0], [0], [1], [0, 0, 1, 1], [], []>} : vector<16x32xbf16>, vector<32x128xbf16>, vector<16x128xf32> -> vector<16x128xf32>
    %36 = vector.extract_strided_slice %32 {offsets = [0, 0], sizes = [1, 128], strides = [1, 1]} : vector<8x128xf32> to vector<1x128xf32>
    %37 = vector.broadcast %36 : vector<1x128xf32> to vector<16x128xf32>
    %38 = arith.addf %35, %37 : vector<16x128xf32>
    %39 = vector.extract_strided_slice %38 {offsets = [0, 0], sizes = [16, 16], strides = [1, 1]} : vector<16x128xf32> to vector<16x16xf32>
    %40 = arith.truncf %39 : vector<16x16xf32> to vector<16x16xbf16>
    %41 = vector.extract_strided_slice %38 {offsets = [0, 32], sizes = [16, 16], strides = [1, 1]} : vector<16x128xf32> to vector<16x16xf32>
    %42 = arith.truncf %41 : vector<16x16xf32> to vector<16x16xbf16>
    %43 = vector.extract_strided_slice %38 {offsets = [0, 64], sizes = [16, 16], strides = [1, 1]} : vector<16x128xf32> to vector<16x16xf32>
    %44 = arith.truncf %43 : vector<16x16xf32> to vector<16x16xbf16>
    %cst_19 = arith.constant dense<0.000000e+00> : vector<16x16xf32>
    %45 = tpu.matmul %40, %42, %cst_19 {dimension_numbers = #tpu.dot_dimension_numbers<[1], [1], [0], [0], [0, 0, 1, 0], [], []>} : vector<16x16xbf16>, vector<16x16xbf16>, vector<16x16xf32> -> vector<16x16xf32>
    %46 = arith.addf %45, %1 : vector<16x16xf32>
    %cst_20 = arith.constant dense<0xFF800000> : vector<16xf32>
    %47 = vector.multi_reduction <maximumf>, %46, %cst_20 [1] : vector<16x16xf32> to vector<16xf32>
    %48 = vector.shape_cast %47 : vector<16xf32> to vector<16x1xf32>
    %49 = vector.broadcast %48 : vector<16x1xf32> to vector<16x16xf32>
    %50 = arith.subf %46, %49 : vector<16x16xf32>
    %51 = math.exp %50 : vector<16x16xf32>
    %cst_21 = arith.constant dense<0.000000e+00> : vector<16xf32>
    %52 = vector.multi_reduction <add>, %51, %cst_21 [1] : vector<16x16xf32> to vector<16xf32>
    %53 = vector.shape_cast %52 : vector<16xf32> to vector<16x1xf32>
    %54 = tpu.reciprocal %53 {approx = true} : vector<16x1xf32> -> vector<16x1xf32>
    %55 = vector.broadcast %54 : vector<16x1xf32> to vector<16x16xf32>
    %56 = arith.mulf %51, %55 : vector<16x16xf32>
    %57 = arith.truncf %56 : vector<16x16xf32> to vector<16x16xbf16>
    %cst_22 = arith.constant dense<0.000000e+00> : vector<16x16xf32>
    %58 = tpu.matmul %57, %44, %cst_22 {dimension_numbers = #tpu.dot_dimension_numbers<[1], [0], [0], [1], [0, 0, 1, 1], [], []>} : vector<16x16xbf16>, vector<16x16xbf16>, vector<16x16xf32> -> vector<16x16xf32>
    %59 = arith.truncf %58 : vector<16x16xf32> to vector<16x16xbf16>
    %60 = vector.extract_strided_slice %30 {offsets = [128, 0], sizes = [16, 32], strides = [1, 1]} : vector<160x32xbf16> to vector<16x32xbf16>
    %cst_23 = arith.constant dense<0.000000e+00> : vector<16x32xf32>
    %61 = tpu.matmul %59, %60, %cst_23 {dimension_numbers = #tpu.dot_dimension_numbers<[1], [0], [0], [1], [0, 0, 1, 1], [], []>} : vector<16x16xbf16>, vector<16x32xbf16>, vector<16x32xf32> -> vector<16x32xf32>
    %62 = vector.extract_strided_slice %38 {offsets = [0, 16], sizes = [16, 16], strides = [1, 1]} : vector<16x128xf32> to vector<16x16xf32>
    %63 = arith.truncf %62 : vector<16x16xf32> to vector<16x16xbf16>
    %64 = vector.extract_strided_slice %38 {offsets = [0, 48], sizes = [16, 16], strides = [1, 1]} : vector<16x128xf32> to vector<16x16xf32>
    %65 = arith.truncf %64 : vector<16x16xf32> to vector<16x16xbf16>
    %66 = vector.extract_strided_slice %38 {offsets = [0, 80], sizes = [16, 16], strides = [1, 1]} : vector<16x128xf32> to vector<16x16xf32>
    %67 = arith.truncf %66 : vector<16x16xf32> to vector<16x16xbf16>
    %cst_24 = arith.constant dense<0.000000e+00> : vector<16x16xf32>
    %68 = tpu.matmul %63, %65, %cst_24 {dimension_numbers = #tpu.dot_dimension_numbers<[1], [1], [0], [0], [0, 0, 1, 0], [], []>} : vector<16x16xbf16>, vector<16x16xbf16>, vector<16x16xf32> -> vector<16x16xf32>
    %69 = arith.addf %68, %1 : vector<16x16xf32>
    %cst_25 = arith.constant dense<0xFF800000> : vector<16xf32>
    %70 = vector.multi_reduction <maximumf>, %69, %cst_25 [1] : vector<16x16xf32> to vector<16xf32>
    %71 = vector.shape_cast %70 : vector<16xf32> to vector<16x1xf32>
    %72 = vector.broadcast %71 : vector<16x1xf32> to vector<16x16xf32>
    %73 = arith.subf %69, %72 : vector<16x16xf32>
    %74 = math.exp %73 : vector<16x16xf32>
    %cst_26 = arith.constant dense<0.000000e+00> : vector<16xf32>
    %75 = vector.multi_reduction <add>, %74, %cst_26 [1] : vector<16x16xf32> to vector<16xf32>
    %76 = vector.shape_cast %75 : vector<16xf32> to vector<16x1xf32>
    %77 = tpu.reciprocal %76 {approx = true} : vector<16x1xf32> -> vector<16x1xf32>
    %78 = vector.broadcast %77 : vector<16x1xf32> to vector<16x16xf32>
    %79 = arith.mulf %74, %78 : vector<16x16xf32>
    %80 = arith.truncf %79 : vector<16x16xf32> to vector<16x16xbf16>
    %cst_27 = arith.constant dense<0.000000e+00> : vector<16x16xf32>
    %81 = tpu.matmul %80, %67, %cst_27 {dimension_numbers = #tpu.dot_dimension_numbers<[1], [0], [0], [1], [0, 0, 1, 1], [], []>} : vector<16x16xbf16>, vector<16x16xbf16>, vector<16x16xf32> -> vector<16x16xf32>
    %82 = arith.truncf %81 : vector<16x16xf32> to vector<16x16xbf16>
    %83 = vector.extract_strided_slice %30 {offsets = [144, 0], sizes = [16, 32], strides = [1, 1]} : vector<160x32xbf16> to vector<16x32xbf16>
    %cst_28 = arith.constant dense<0.000000e+00> : vector<16x32xf32>
    %84 = tpu.matmul %82, %83, %cst_28 {dimension_numbers = #tpu.dot_dimension_numbers<[1], [0], [0], [1], [0, 0, 1, 1], [], []>} : vector<16x16xbf16>, vector<16x32xbf16>, vector<16x32xf32> -> vector<16x32xf32>
    %85 = arith.addf %61, %84 : vector<16x32xf32>
    %86 = vector.extract_strided_slice %32 {offsets = [2, 0], sizes = [1, 32], strides = [1, 1]} : vector<8x128xf32> to vector<1x32xf32>
    %87 = vector.broadcast %86 : vector<1x32xf32> to vector<16x32xf32>
    %88 = arith.addf %85, %87 : vector<16x32xf32>
    %89 = arith.addf %26, %88 : vector<16x32xf32>
    %90 = vector.extract_strided_slice %32 {offsets = [3, 0], sizes = [1, 32], strides = [1, 1]} : vector<8x128xf32> to vector<1x32xf32>
    %91 = vector.extract_strided_slice %32 {offsets = [4, 0], sizes = [1, 32], strides = [1, 1]} : vector<8x128xf32> to vector<1x32xf32>
    %cst_29 = arith.constant dense<0.000000e+00> : vector<16xf32>
    %92 = vector.multi_reduction <add>, %89, %cst_29 [1] : vector<16x32xf32> to vector<16xf32>
    %93 = vector.shape_cast %92 : vector<16xf32> to vector<16x1xf32>
    %cst_30 = arith.constant 3.200000e+01 : f32
    %94 = vector.broadcast %cst_30 : f32 to vector<16x1xf32>
    %95 = arith.divf %93, %94 : vector<16x1xf32>
    %96 = vector.broadcast %95 : vector<16x1xf32> to vector<16x32xf32>
    %97 = arith.subf %89, %96 : vector<16x32xf32>
    %98 = arith.mulf %97, %97 : vector<16x32xf32>
    %cst_31 = arith.constant dense<0.000000e+00> : vector<16xf32>
    %99 = vector.multi_reduction <add>, %98, %cst_31 [1] : vector<16x32xf32> to vector<16xf32>
    %100 = vector.shape_cast %99 : vector<16xf32> to vector<16x1xf32>
    %cst_32 = arith.constant 3.200000e+01 : f32
    %101 = vector.broadcast %cst_32 : f32 to vector<16x1xf32>
    %102 = arith.divf %100, %101 : vector<16x1xf32>
    %103 = vector.broadcast %95 : vector<16x1xf32> to vector<16x32xf32>
    %104 = arith.subf %89, %103 : vector<16x32xf32>
    %cst_33 = arith.constant 9.99999996E-13 : f32
    %105 = vector.broadcast %cst_33 : f32 to vector<16x1xf32>
    %106 = arith.addf %102, %105 : vector<16x1xf32>
    %107 = math.rsqrt %106 : vector<16x1xf32>
    %108 = vector.broadcast %107 : vector<16x1xf32> to vector<16x32xf32>
    %109 = arith.mulf %104, %108 : vector<16x32xf32>
    %110 = vector.broadcast %90 : vector<1x32xf32> to vector<16x32xf32>
    %111 = arith.mulf %109, %110 : vector<16x32xf32>
    %112 = vector.broadcast %91 : vector<1x32xf32> to vector<16x32xf32>
    %113 = arith.addf %111, %112 : vector<16x32xf32>
    %114 = arith.truncf %113 : vector<16x32xf32> to vector<16x32xbf16>
    %115 = vector.extract_strided_slice %28 {offsets = [0, 128], sizes = [32, 128], strides = [1, 1]} : vector<32x256xbf16> to vector<32x128xbf16>
    %cst_34 = arith.constant dense<0.000000e+00> : vector<16x128xf32>
    %116 = tpu.matmul %114, %115, %cst_34 {dimension_numbers = #tpu.dot_dimension_numbers<[1], [0], [0], [1], [0, 0, 1, 1], [], []>} : vector<16x32xbf16>, vector<32x128xbf16>, vector<16x128xf32> -> vector<16x128xf32>
    %117 = vector.extract_strided_slice %32 {offsets = [1, 0], sizes = [1, 128], strides = [1, 1]} : vector<8x128xf32> to vector<1x128xf32>
    %118 = vector.broadcast %117 : vector<1x128xf32> to vector<16x128xf32>
    %119 = arith.addf %116, %118 : vector<16x128xf32>
    %120 = arith.mulf %119, %119 : vector<16x128xf32>
    %121 = arith.mulf %119, %120 : vector<16x128xf32>
    %cst_35 = arith.constant 4.471500e-02 : f32
    %122 = vector.broadcast %cst_35 : f32 to vector<16x128xf32>
    %123 = arith.mulf %122, %121 : vector<16x128xf32>
    %124 = arith.addf %119, %123 : vector<16x128xf32>
    %cst_36 = arith.constant 0.797884583 : f32
    %125 = vector.broadcast %cst_36 : f32 to vector<16x128xf32>
    %126 = arith.mulf %125, %124 : vector<16x128xf32>
    %127 = math.tanh %126 : vector<16x128xf32>
    %cst_37 = arith.constant 1.000000e+00 : f32
    %128 = vector.broadcast %cst_37 : f32 to vector<16x128xf32>
    %129 = arith.addf %128, %127 : vector<16x128xf32>
    %cst_38 = arith.constant 5.000000e-01 : f32
    %130 = vector.broadcast %cst_38 : f32 to vector<16x128xf32>
    %131 = arith.mulf %130, %129 : vector<16x128xf32>
    %132 = arith.mulf %119, %131 : vector<16x128xf32>
    %133 = arith.truncf %132 : vector<16x128xf32> to vector<16x128xbf16>
    %134 = vector.extract_strided_slice %30 {offsets = [0, 0], sizes = [128, 32], strides = [1, 1]} : vector<160x32xbf16> to vector<128x32xbf16>
    %cst_39 = arith.constant dense<0.000000e+00> : vector<16x32xf32>
    %135 = tpu.matmul %133, %134, %cst_39 {dimension_numbers = #tpu.dot_dimension_numbers<[1], [0], [0], [1], [0, 0, 1, 1], [], []>} : vector<16x128xbf16>, vector<128x32xbf16>, vector<16x32xf32> -> vector<16x32xf32>
    %136 = vector.extract_strided_slice %32 {offsets = [5, 0], sizes = [1, 32], strides = [1, 1]} : vector<8x128xf32> to vector<1x32xf32>
    %137 = vector.broadcast %136 : vector<1x32xf32> to vector<16x32xf32>
    %138 = arith.addf %135, %137 : vector<16x32xf32>
    %139 = arith.addf %113, %138 : vector<16x32xf32>
    %140 = vector.extract_strided_slice %32 {offsets = [6, 0], sizes = [1, 32], strides = [1, 1]} : vector<8x128xf32> to vector<1x32xf32>
    %141 = vector.extract_strided_slice %32 {offsets = [7, 0], sizes = [1, 32], strides = [1, 1]} : vector<8x128xf32> to vector<1x32xf32>
    %cst_40 = arith.constant dense<0.000000e+00> : vector<16xf32>
    %142 = vector.multi_reduction <add>, %139, %cst_40 [1] : vector<16x32xf32> to vector<16xf32>
    %143 = vector.shape_cast %142 : vector<16xf32> to vector<16x1xf32>
    %cst_41 = arith.constant 3.200000e+01 : f32
    %144 = vector.broadcast %cst_41 : f32 to vector<16x1xf32>
    %145 = arith.divf %143, %144 : vector<16x1xf32>
    %146 = vector.broadcast %145 : vector<16x1xf32> to vector<16x32xf32>
    %147 = arith.subf %139, %146 : vector<16x32xf32>
    %148 = arith.mulf %147, %147 : vector<16x32xf32>
    %cst_42 = arith.constant dense<0.000000e+00> : vector<16xf32>
    %149 = vector.multi_reduction <add>, %148, %cst_42 [1] : vector<16x32xf32> to vector<16xf32>
    %150 = vector.shape_cast %149 : vector<16xf32> to vector<16x1xf32>
    %cst_43 = arith.constant 3.200000e+01 : f32
    %151 = vector.broadcast %cst_43 : f32 to vector<16x1xf32>
    %152 = arith.divf %150, %151 : vector<16x1xf32>
    %153 = vector.broadcast %145 : vector<16x1xf32> to vector<16x32xf32>
    %154 = arith.subf %139, %153 : vector<16x32xf32>
    %cst_44 = arith.constant 9.99999996E-13 : f32
    %155 = vector.broadcast %cst_44 : f32 to vector<16x1xf32>
    %156 = arith.addf %152, %155 : vector<16x1xf32>
    %157 = math.rsqrt %156 : vector<16x1xf32>
    %158 = vector.broadcast %157 : vector<16x1xf32> to vector<16x32xf32>
    %159 = arith.mulf %154, %158 : vector<16x32xf32>
    %160 = vector.broadcast %140 : vector<1x32xf32> to vector<16x32xf32>
    %161 = arith.mulf %159, %160 : vector<16x32xf32>
    %162 = vector.broadcast %141 : vector<1x32xf32> to vector<16x32xf32>
    %163 = arith.addf %161, %162 : vector<16x32xf32>
    %c1 = arith.constant 1 : index
    %c0_45 = arith.constant 0 : index
    %c0_46 = arith.constant 0 : index
    %164 = vector.load %arg3[%c1, %c0_45, %c0_46] : memref<3x32x256xbf16, #tpu.memory_space<vmem>>, vector<1x32x256xbf16>
    %165 = vector.shape_cast %164 : vector<1x32x256xbf16> to vector<32x256xbf16>
    %c1_47 = arith.constant 1 : index
    %c0_48 = arith.constant 0 : index
    %c0_49 = arith.constant 0 : index
    %166 = vector.load %arg4[%c1_47, %c0_48, %c0_49] : memref<2x160x32xbf16, #tpu.memory_space<vmem>>, vector<1x160x32xbf16>
    %167 = vector.shape_cast %166 : vector<1x160x32xbf16> to vector<160x32xbf16>
    %c1_50 = arith.constant 1 : index
    %c0_51 = arith.constant 0 : index
    %c0_52 = arith.constant 0 : index
    %168 = vector.load %arg5[%c1_50, %c0_51, %c0_52] : memref<2x8x128xf32, #tpu.memory_space<vmem>>, vector<1x8x128xf32>
    %169 = vector.shape_cast %168 : vector<1x8x128xf32> to vector<8x128xf32>
    %170 = arith.truncf %163 : vector<16x32xf32> to vector<16x32xbf16>
    %171 = vector.extract_strided_slice %165 {offsets = [0, 0], sizes = [32, 128], strides = [1, 1]} : vector<32x256xbf16> to vector<32x128xbf16>
    %cst_53 = arith.constant dense<0.000000e+00> : vector<16x128xf32>
    %172 = tpu.matmul %170, %171, %cst_53 {dimension_numbers = #tpu.dot_dimension_numbers<[1], [0], [0], [1], [0, 0, 1, 1], [], []>} : vector<16x32xbf16>, vector<32x128xbf16>, vector<16x128xf32> -> vector<16x128xf32>
    %173 = vector.extract_strided_slice %169 {offsets = [0, 0], sizes = [1, 128], strides = [1, 1]} : vector<8x128xf32> to vector<1x128xf32>
    %174 = vector.broadcast %173 : vector<1x128xf32> to vector<16x128xf32>
    %175 = arith.addf %172, %174 : vector<16x128xf32>
    %176 = vector.extract_strided_slice %175 {offsets = [0, 0], sizes = [16, 16], strides = [1, 1]} : vector<16x128xf32> to vector<16x16xf32>
    %177 = arith.truncf %176 : vector<16x16xf32> to vector<16x16xbf16>
    %178 = vector.extract_strided_slice %175 {offsets = [0, 32], sizes = [16, 16], strides = [1, 1]} : vector<16x128xf32> to vector<16x16xf32>
    %179 = arith.truncf %178 : vector<16x16xf32> to vector<16x16xbf16>
    %180 = vector.extract_strided_slice %175 {offsets = [0, 64], sizes = [16, 16], strides = [1, 1]} : vector<16x128xf32> to vector<16x16xf32>
    %181 = arith.truncf %180 : vector<16x16xf32> to vector<16x16xbf16>
    %cst_54 = arith.constant dense<0.000000e+00> : vector<16x16xf32>
    %182 = tpu.matmul %177, %179, %cst_54 {dimension_numbers = #tpu.dot_dimension_numbers<[1], [1], [0], [0], [0, 0, 1, 0], [], []>} : vector<16x16xbf16>, vector<16x16xbf16>, vector<16x16xf32> -> vector<16x16xf32>
    %183 = arith.addf %182, %1 : vector<16x16xf32>
    %cst_55 = arith.constant dense<0xFF800000> : vector<16xf32>
    %184 = vector.multi_reduction <maximumf>, %183, %cst_55 [1] : vector<16x16xf32> to vector<16xf32>
    %185 = vector.shape_cast %184 : vector<16xf32> to vector<16x1xf32>
    %186 = vector.broadcast %185 : vector<16x1xf32> to vector<16x16xf32>
    %187 = arith.subf %183, %186 : vector<16x16xf32>
    %188 = math.exp %187 : vector<16x16xf32>
    %cst_56 = arith.constant dense<0.000000e+00> : vector<16xf32>
    %189 = vector.multi_reduction <add>, %188, %cst_56 [1] : vector<16x16xf32> to vector<16xf32>
    %190 = vector.shape_cast %189 : vector<16xf32> to vector<16x1xf32>
    %191 = tpu.reciprocal %190 {approx = true} : vector<16x1xf32> -> vector<16x1xf32>
    %192 = vector.broadcast %191 : vector<16x1xf32> to vector<16x16xf32>
    %193 = arith.mulf %188, %192 : vector<16x16xf32>
    %194 = arith.truncf %193 : vector<16x16xf32> to vector<16x16xbf16>
    %cst_57 = arith.constant dense<0.000000e+00> : vector<16x16xf32>
    %195 = tpu.matmul %194, %181, %cst_57 {dimension_numbers = #tpu.dot_dimension_numbers<[1], [0], [0], [1], [0, 0, 1, 1], [], []>} : vector<16x16xbf16>, vector<16x16xbf16>, vector<16x16xf32> -> vector<16x16xf32>
    %196 = arith.truncf %195 : vector<16x16xf32> to vector<16x16xbf16>
    %197 = vector.extract_strided_slice %167 {offsets = [128, 0], sizes = [16, 32], strides = [1, 1]} : vector<160x32xbf16> to vector<16x32xbf16>
    %cst_58 = arith.constant dense<0.000000e+00> : vector<16x32xf32>
    %198 = tpu.matmul %196, %197, %cst_58 {dimension_numbers = #tpu.dot_dimension_numbers<[1], [0], [0], [1], [0, 0, 1, 1], [], []>} : vector<16x16xbf16>, vector<16x32xbf16>, vector<16x32xf32> -> vector<16x32xf32>
    %199 = vector.extract_strided_slice %175 {offsets = [0, 16], sizes = [16, 16], strides = [1, 1]} : vector<16x128xf32> to vector<16x16xf32>
    %200 = arith.truncf %199 : vector<16x16xf32> to vector<16x16xbf16>
    %201 = vector.extract_strided_slice %175 {offsets = [0, 48], sizes = [16, 16], strides = [1, 1]} : vector<16x128xf32> to vector<16x16xf32>
    %202 = arith.truncf %201 : vector<16x16xf32> to vector<16x16xbf16>
    %203 = vector.extract_strided_slice %175 {offsets = [0, 80], sizes = [16, 16], strides = [1, 1]} : vector<16x128xf32> to vector<16x16xf32>
    %204 = arith.truncf %203 : vector<16x16xf32> to vector<16x16xbf16>
    %cst_59 = arith.constant dense<0.000000e+00> : vector<16x16xf32>
    %205 = tpu.matmul %200, %202, %cst_59 {dimension_numbers = #tpu.dot_dimension_numbers<[1], [1], [0], [0], [0, 0, 1, 0], [], []>} : vector<16x16xbf16>, vector<16x16xbf16>, vector<16x16xf32> -> vector<16x16xf32>
    %206 = arith.addf %205, %1 : vector<16x16xf32>
    %cst_60 = arith.constant dense<0xFF800000> : vector<16xf32>
    %207 = vector.multi_reduction <maximumf>, %206, %cst_60 [1] : vector<16x16xf32> to vector<16xf32>
    %208 = vector.shape_cast %207 : vector<16xf32> to vector<16x1xf32>
    %209 = vector.broadcast %208 : vector<16x1xf32> to vector<16x16xf32>
    %210 = arith.subf %206, %209 : vector<16x16xf32>
    %211 = math.exp %210 : vector<16x16xf32>
    %cst_61 = arith.constant dense<0.000000e+00> : vector<16xf32>
    %212 = vector.multi_reduction <add>, %211, %cst_61 [1] : vector<16x16xf32> to vector<16xf32>
    %213 = vector.shape_cast %212 : vector<16xf32> to vector<16x1xf32>
    %214 = tpu.reciprocal %213 {approx = true} : vector<16x1xf32> -> vector<16x1xf32>
    %215 = vector.broadcast %214 : vector<16x1xf32> to vector<16x16xf32>
    %216 = arith.mulf %211, %215 : vector<16x16xf32>
    %217 = arith.truncf %216 : vector<16x16xf32> to vector<16x16xbf16>
    %cst_62 = arith.constant dense<0.000000e+00> : vector<16x16xf32>
    %218 = tpu.matmul %217, %204, %cst_62 {dimension_numbers = #tpu.dot_dimension_numbers<[1], [0], [0], [1], [0, 0, 1, 1], [], []>} : vector<16x16xbf16>, vector<16x16xbf16>, vector<16x16xf32> -> vector<16x16xf32>
    %219 = arith.truncf %218 : vector<16x16xf32> to vector<16x16xbf16>
    %220 = vector.extract_strided_slice %167 {offsets = [144, 0], sizes = [16, 32], strides = [1, 1]} : vector<160x32xbf16> to vector<16x32xbf16>
    %cst_63 = arith.constant dense<0.000000e+00> : vector<16x32xf32>
    %221 = tpu.matmul %219, %220, %cst_63 {dimension_numbers = #tpu.dot_dimension_numbers<[1], [0], [0], [1], [0, 0, 1, 1], [], []>} : vector<16x16xbf16>, vector<16x32xbf16>, vector<16x32xf32> -> vector<16x32xf32>
    %222 = arith.addf %198, %221 : vector<16x32xf32>
    %223 = vector.extract_strided_slice %169 {offsets = [2, 0], sizes = [1, 32], strides = [1, 1]} : vector<8x128xf32> to vector<1x32xf32>
    %224 = vector.broadcast %223 : vector<1x32xf32> to vector<16x32xf32>
    %225 = arith.addf %222, %224 : vector<16x32xf32>
    %226 = arith.addf %163, %225 : vector<16x32xf32>
    %227 = vector.extract_strided_slice %169 {offsets = [3, 0], sizes = [1, 32], strides = [1, 1]} : vector<8x128xf32> to vector<1x32xf32>
    %228 = vector.extract_strided_slice %169 {offsets = [4, 0], sizes = [1, 32], strides = [1, 1]} : vector<8x128xf32> to vector<1x32xf32>
    %cst_64 = arith.constant dense<0.000000e+00> : vector<16xf32>
    %229 = vector.multi_reduction <add>, %226, %cst_64 [1] : vector<16x32xf32> to vector<16xf32>
    %230 = vector.shape_cast %229 : vector<16xf32> to vector<16x1xf32>
    %cst_65 = arith.constant 3.200000e+01 : f32
    %231 = vector.broadcast %cst_65 : f32 to vector<16x1xf32>
    %232 = arith.divf %230, %231 : vector<16x1xf32>
    %233 = vector.broadcast %232 : vector<16x1xf32> to vector<16x32xf32>
    %234 = arith.subf %226, %233 : vector<16x32xf32>
    %235 = arith.mulf %234, %234 : vector<16x32xf32>
    %cst_66 = arith.constant dense<0.000000e+00> : vector<16xf32>
    %236 = vector.multi_reduction <add>, %235, %cst_66 [1] : vector<16x32xf32> to vector<16xf32>
    %237 = vector.shape_cast %236 : vector<16xf32> to vector<16x1xf32>
    %cst_67 = arith.constant 3.200000e+01 : f32
    %238 = vector.broadcast %cst_67 : f32 to vector<16x1xf32>
    %239 = arith.divf %237, %238 : vector<16x1xf32>
    %240 = vector.broadcast %232 : vector<16x1xf32> to vector<16x32xf32>
    %241 = arith.subf %226, %240 : vector<16x32xf32>
    %cst_68 = arith.constant 9.99999996E-13 : f32
    %242 = vector.broadcast %cst_68 : f32 to vector<16x1xf32>
    %243 = arith.addf %239, %242 : vector<16x1xf32>
    %244 = math.rsqrt %243 : vector<16x1xf32>
    %245 = vector.broadcast %244 : vector<16x1xf32> to vector<16x32xf32>
    %246 = arith.mulf %241, %245 : vector<16x32xf32>
    %247 = vector.broadcast %227 : vector<1x32xf32> to vector<16x32xf32>
    %248 = arith.mulf %246, %247 : vector<16x32xf32>
    %249 = vector.broadcast %228 : vector<1x32xf32> to vector<16x32xf32>
    %250 = arith.addf %248, %249 : vector<16x32xf32>
    %251 = arith.truncf %250 : vector<16x32xf32> to vector<16x32xbf16>
    %252 = vector.extract_strided_slice %165 {offsets = [0, 128], sizes = [32, 128], strides = [1, 1]} : vector<32x256xbf16> to vector<32x128xbf16>
    %cst_69 = arith.constant dense<0.000000e+00> : vector<16x128xf32>
    %253 = tpu.matmul %251, %252, %cst_69 {dimension_numbers = #tpu.dot_dimension_numbers<[1], [0], [0], [1], [0, 0, 1, 1], [], []>} : vector<16x32xbf16>, vector<32x128xbf16>, vector<16x128xf32> -> vector<16x128xf32>
    %254 = vector.extract_strided_slice %169 {offsets = [1, 0], sizes = [1, 128], strides = [1, 1]} : vector<8x128xf32> to vector<1x128xf32>
    %255 = vector.broadcast %254 : vector<1x128xf32> to vector<16x128xf32>
    %256 = arith.addf %253, %255 : vector<16x128xf32>
    %257 = arith.mulf %256, %256 : vector<16x128xf32>
    %258 = arith.mulf %256, %257 : vector<16x128xf32>
    %cst_70 = arith.constant 4.471500e-02 : f32
    %259 = vector.broadcast %cst_70 : f32 to vector<16x128xf32>
    %260 = arith.mulf %259, %258 : vector<16x128xf32>
    %261 = arith.addf %256, %260 : vector<16x128xf32>
    %cst_71 = arith.constant 0.797884583 : f32
    %262 = vector.broadcast %cst_71 : f32 to vector<16x128xf32>
    %263 = arith.mulf %262, %261 : vector<16x128xf32>
    %264 = math.tanh %263 : vector<16x128xf32>
    %cst_72 = arith.constant 1.000000e+00 : f32
    %265 = vector.broadcast %cst_72 : f32 to vector<16x128xf32>
    %266 = arith.addf %265, %264 : vector<16x128xf32>
    %cst_73 = arith.constant 5.000000e-01 : f32
    %267 = vector.broadcast %cst_73 : f32 to vector<16x128xf32>
    %268 = arith.mulf %267, %266 : vector<16x128xf32>
    %269 = arith.mulf %256, %268 : vector<16x128xf32>
    %270 = arith.truncf %269 : vector<16x128xf32> to vector<16x128xbf16>
    %271 = vector.extract_strided_slice %167 {offsets = [0, 0], sizes = [128, 32], strides = [1, 1]} : vector<160x32xbf16> to vector<128x32xbf16>
    %cst_74 = arith.constant dense<0.000000e+00> : vector<16x32xf32>
    %272 = tpu.matmul %270, %271, %cst_74 {dimension_numbers = #tpu.dot_dimension_numbers<[1], [0], [0], [1], [0, 0, 1, 1], [], []>} : vector<16x128xbf16>, vector<128x32xbf16>, vector<16x32xf32> -> vector<16x32xf32>
    %273 = vector.extract_strided_slice %169 {offsets = [5, 0], sizes = [1, 32], strides = [1, 1]} : vector<8x128xf32> to vector<1x32xf32>
    %274 = vector.broadcast %273 : vector<1x32xf32> to vector<16x32xf32>
    %275 = arith.addf %272, %274 : vector<16x32xf32>
    %276 = arith.addf %250, %275 : vector<16x32xf32>
    %277 = vector.extract_strided_slice %169 {offsets = [6, 0], sizes = [1, 32], strides = [1, 1]} : vector<8x128xf32> to vector<1x32xf32>
    %278 = vector.extract_strided_slice %169 {offsets = [7, 0], sizes = [1, 32], strides = [1, 1]} : vector<8x128xf32> to vector<1x32xf32>
    %cst_75 = arith.constant dense<0.000000e+00> : vector<16xf32>
    %279 = vector.multi_reduction <add>, %276, %cst_75 [1] : vector<16x32xf32> to vector<16xf32>
    %280 = vector.shape_cast %279 : vector<16xf32> to vector<16x1xf32>
    %cst_76 = arith.constant 3.200000e+01 : f32
    %281 = vector.broadcast %cst_76 : f32 to vector<16x1xf32>
    %282 = arith.divf %280, %281 : vector<16x1xf32>
    %283 = vector.broadcast %282 : vector<16x1xf32> to vector<16x32xf32>
    %284 = arith.subf %276, %283 : vector<16x32xf32>
    %285 = arith.mulf %284, %284 : vector<16x32xf32>
    %cst_77 = arith.constant dense<0.000000e+00> : vector<16xf32>
    %286 = vector.multi_reduction <add>, %285, %cst_77 [1] : vector<16x32xf32> to vector<16xf32>
    %287 = vector.shape_cast %286 : vector<16xf32> to vector<16x1xf32>
    %cst_78 = arith.constant 3.200000e+01 : f32
    %288 = vector.broadcast %cst_78 : f32 to vector<16x1xf32>
    %289 = arith.divf %287, %288 : vector<16x1xf32>
    %290 = vector.broadcast %282 : vector<16x1xf32> to vector<16x32xf32>
    %291 = arith.subf %276, %290 : vector<16x32xf32>
    %cst_79 = arith.constant 9.99999996E-13 : f32
    %292 = vector.broadcast %cst_79 : f32 to vector<16x1xf32>
    %293 = arith.addf %289, %292 : vector<16x1xf32>
    %294 = math.rsqrt %293 : vector<16x1xf32>
    %295 = vector.broadcast %294 : vector<16x1xf32> to vector<16x32xf32>
    %296 = arith.mulf %291, %295 : vector<16x32xf32>
    %297 = vector.broadcast %277 : vector<1x32xf32> to vector<16x32xf32>
    %298 = arith.mulf %296, %297 : vector<16x32xf32>
    %299 = vector.broadcast %278 : vector<1x32xf32> to vector<16x32xf32>
    %300 = arith.addf %298, %299 : vector<16x32xf32>
    %c2 = arith.constant 2 : index
    %c0_80 = arith.constant 0 : index
    %c0_81 = arith.constant 0 : index
    %301 = vector.load %arg3[%c2, %c0_80, %c0_81] : memref<3x32x256xbf16, #tpu.memory_space<vmem>>, vector<1x32x256xbf16>
    %302 = vector.shape_cast %301 : vector<1x32x256xbf16> to vector<32x256xbf16>
    %303 = vector.extract_strided_slice %302 {offsets = [0, 0], sizes = [32, 128], strides = [1, 1]} : vector<32x256xbf16> to vector<32x128xbf16>
    %304 = arith.truncf %300 : vector<16x32xf32> to vector<16x32xbf16>
    %cst_82 = arith.constant dense<0.000000e+00> : vector<16x128xf32>
    %305 = tpu.matmul %304, %303, %cst_82 {dimension_numbers = #tpu.dot_dimension_numbers<[1], [0], [0], [1], [0, 0, 1, 1], [], []>} : vector<16x32xbf16>, vector<32x128xbf16>, vector<16x128xf32> -> vector<16x128xf32>
    %306 = vector.extract_strided_slice %0 {offsets = [2, 0], sizes = [1, 128], strides = [1, 1]} : vector<8x128xf32> to vector<1x128xf32>
    %307 = vector.broadcast %306 : vector<1x128xf32> to vector<16x128xf32>
    %308 = arith.addf %305, %307 : vector<16x128xf32>
    %c0_83 = arith.constant 0 : index
    %c0_84 = arith.constant 0 : index
    %309 = vector.load %arg7[%c0_83, %c0_84] : memref<16x128xf32, #tpu.memory_space<vmem>>, vector<16x128xf32>
    tpu.vector_store %arg7[%c0_83, %c0_84], %308 {strides = array<i32>} : memref<16x128xf32, #tpu.memory_space<vmem>>, vector<16x128xf32>,
    %c0_85 = arith.constant 0 : index
    %c0_86 = arith.constant 0 : index
    %310 = vector.load %arg2[%c0_85, %c0_86] : memref<16x1xi32, #tpu.memory_space<vmem>>, vector<16x1xi32>
    %cst_87 = arith.constant dense<0xFF800000> : vector<16xf32>
    %311 = vector.multi_reduction <maximumf>, %308, %cst_87 [1] : vector<16x128xf32> to vector<16xf32>
    %312 = vector.shape_cast %311 : vector<16xf32> to vector<16x1xf32>
    %313 = vector.broadcast %312 : vector<16x1xf32> to vector<16x128xf32>
    %314 = arith.subf %308, %313 : vector<16x128xf32>
    %315 = math.exp %314 : vector<16x128xf32>
    %cst_88 = arith.constant dense<0.000000e+00> : vector<16xf32>
    %316 = vector.multi_reduction <add>, %315, %cst_88 [1] : vector<16x128xf32> to vector<16xf32>
    %317 = vector.shape_cast %316 : vector<16xf32> to vector<16x1xf32>
    %318 = math.log %317 : vector<16x1xf32>
    %319 = arith.addf %318, %312 : vector<16x1xf32>
    %320 = vector.broadcast %319 : vector<16x1xf32> to vector<16x128xf32>
    %321 = arith.subf %308, %320 : vector<16x128xf32>
    %c-100_i32 = arith.constant -100 : i32
    %322 = vector.broadcast %c-100_i32 : i32 to vector<16x1xi32>
    %323 = arith.cmpi ne, %310, %322 : vector<16x1xi32>
    %c0_i32 = arith.constant 0 : i32
    %324 = vector.broadcast %c0_i32 : i32 to vector<16x1xi32>
    %325 = arith.select %323, %310, %324 : vector<16x1xi1>, vector<16x1xi32>
    %326 = tpu.iota {dimensions = array<i32: 1>} : vector<16x128xi32>
    %327 = vector.broadcast %325 : vector<16x1xi32> to vector<16x128xi32>
    %328 = arith.cmpi eq, %326, %327 : vector<16x128xi32>
    %329 = arith.extui %328 : vector<16x128xi1> to vector<16x128xi32>
    %330 = arith.sitofp %329 : vector<16x128xi32> to vector<16x128xf32>
    %331 = arith.mulf %321, %330 : vector<16x128xf32>
    %cst_89 = arith.constant dense<0.000000e+00> : vector<16xf32>
    %332 = vector.multi_reduction <add>, %331, %cst_89 [1] : vector<16x128xf32> to vector<16xf32>
    %333 = vector.shape_cast %332 : vector<16xf32> to vector<16x1xf32>
    %334 = arith.extui %323 : vector<16x1xi1> to vector<16x1xi32>
    %335 = arith.sitofp %334 : vector<16x1xi32> to vector<16x1xf32>
    %cst_90 = arith.constant 0.000000e+00 : f32
    %336 = vector.broadcast %cst_90 : f32 to vector<16x1xf32>
    %337 = arith.subf %336, %333 : vector<16x1xf32>
    %338 = arith.mulf %337, %335 : vector<16x1xf32>
    %cst_91 = arith.constant dense<0.000000e+00> : vector<1xf32>
    %339 = vector.multi_reduction <add>, %338, %cst_91 [0] : vector<16x1xf32> to vector<1xf32>
    %340 = vector.shape_cast %339 : vector<1xf32> to vector<1x1xf32>
    %cst_92 = arith.constant dense<0.000000e+00> : vector<1xf32>
    %341 = vector.multi_reduction <add>, %335, %cst_92 [0] : vector<16x1xf32> to vector<1xf32>
    %342 = vector.shape_cast %341 : vector<1xf32> to vector<1x1xf32>
    %cst_93 = arith.constant 1.000000e+00 : f32
    %343 = vector.broadcast %cst_93 : f32 to vector<1x1xf32>
    %344 = arith.maximumf %342, %343 : vector<1x1xf32>
    %345 = arith.divf %340, %344 : vector<1x1xf32>
    %c0_94 = arith.constant 0 : index
    %c0_95 = arith.constant 0 : index
    %346 = vector.load %arg8[%c0_94, %c0_95] : memref<1x1xf32, #tpu.memory_space<vmem>>, vector<1x1xf32>
    tpu.vector_store %arg8[%c0_94, %c0_95], %345 {strides = array<i32>} : memref<1x1xf32, #tpu.memory_space<vmem>>, vector<1x1xf32>,
    return
  }
}

</mosaic_0001>

<llo_original>
// kernel: ner_forward.1
$region0: #{ner_forward.1}
  #allocation0 [shape = 'u32[]', space=smem, size = 0x4, offset = 0x4, fixed_abs, tag = 'smem constant byte address 0x4 - core index']
  #allocation1 [shape = 'u32[72,128]{1,0:T(1,128)}', space=vmem, size = 0x9000, scoped, tag = 'internal scratch']
  %s0 = inlined_call_operand.vmem [shape: f32[16,32], index: 0, kind: input, shape index: {}]
  %s1 = inlined_call_operand.vmem [shape: f32[16,16], index: 1, kind: input, shape index: {}]
  %s2 = inlined_call_operand.vmem [shape: s32[16,1], index: 2, kind: input, shape index: {}]
  %s3 = inlined_call_operand.vmem [shape: bf16[3,32,256], index: 3, kind: input, shape index: {}]
  %s4 = inlined_call_operand.vmem [shape: bf16[2,160,32], index: 4, kind: input, shape index: {}]
  %s5 = inlined_call_operand.vmem [shape: f32[2,8,128], index: 5, kind: input, shape index: {}]
  %s6 = inlined_call_operand.vmem [shape: f32[8,128], index: 6, kind: input, shape index: {}]
  %s7 = inlined_call_operand.vmem [shape: f32[16,128], index: 7, kind: output, shape index: {0}]
  %s8 = inlined_call_operand.hbm [shape: f32[1,1], index: 8, kind: output, shape index: {1}]
  %9 = xla_tuple %s7, %s8
  %s10 = sld [smem:[#allocation0]]
  $region46: #{ner_forward.1} parent=0
    _
  %s12 = ssub.s32 1, %s10
  %s13 = scalar_select 0, %s12, %s10
  $region1: #{ner_forward.1} parent=0
    #allocation2 [shape = 'u8[512]{0}', space=vmem, size = 0x400, scoped, tag = 'output window, operand 1, single buffered']
    #allocation3 [shape = 's32[1]{0}', space=sflag, size = 0x4, scoped, tag = 'scoped memory for ner_forward.1']
    %14 = vsyncpa [#allocation3], 0
    // Predicated region
    $region2: #{ner_forward.1} parent=1 // pred_check
      _
    $region3: #{ner_forward.1} parent=1 // pred_check_branch
      %16 = sbr.rel (0) target = $region5
    $region4: #{ner_forward.1} parent=1 // pred_region
      _
    $region5: #{ner_forward.1} parent=1 // pred_fallthru
      _
    // Predicated region
    $region6: #{ner_forward.1} parent=1 // pred_check
      _
    $region7: #{ner_forward.1} parent=1 // pred_check_branch
      %18 = sbr.rel (0) target = $region9
    $region8: #{ner_forward.1} parent=1 // pred_region
      _
    $region9: #{ner_forward.1} parent=1 // pred_fallthru
      _
    // Predicated region
    $region10: #{ner_forward.1} parent=1 // pred_check
      _
    $region11: #{ner_forward.1} parent=1 // pred_check_branch
      %20 = sbr.rel (0) target = $region13
    $region12: #{ner_forward.1} parent=1 // pred_region
      _
    $region13: #{ner_forward.1} parent=1 // pred_fallthru
      _
    // Predicated region
    $region14: #{ner_forward.1} parent=1 // pred_check
      _
    $region15: #{ner_forward.1} parent=1 // pred_check_branch
      %22 = sbr.rel (0) target = $region17
    $region16: #{ner_forward.1} parent=1 // pred_region
      _
    $region17: #{ner_forward.1} parent=1 // pred_fallthru
      _
    // Predicated region
    $region18: #{ner_forward.1} parent=1 // pred_check
      _
    $region19: #{ner_forward.1} parent=1 // pred_check_branch
      %24 = sbr.rel (0) target = $region21
    $region20: #{ner_forward.1} parent=1 // pred_region
      _
    $region21: #{ner_forward.1} parent=1 // pred_fallthru
      _
    // Predicated region
    $region22: #{ner_forward.1} parent=1 // pred_check
      _
    $region23: #{ner_forward.1} parent=1 // pred_check_branch
      %26 = sbr.rel (0) target = $region25
    $region24: #{ner_forward.1} parent=1 // pred_region
      _
    $region25: #{ner_forward.1} parent=1 // pred_fallthru
      _
    // Predicated region
    $region26: #{ner_forward.1} parent=1 // pred_check
      _
    $region27: #{ner_forward.1} parent=1 // pred_check_branch
      %28 = sbr.rel (0) target = $region29
    $region28: #{ner_forward.1} parent=1 // pred_region
      _
    $region29: #{ner_forward.1} parent=1 // pred_fallthru
      _
    %v30 = vld [vmem:[%s6] sm:$0xff]
    %v31 = vld [vmem:[%s1] sm:$0xff]
    %v32 = vld [vmem:[%s1 + $0x8] sm:$0xff]
    %v33 = vld [vmem:[%s0] sm:$0xff]
    %v34 = vld [vmem:[%s0 + $0x8] sm:$0xff]
    %vm35 = vcmask 261120
    %v36 = vsel %vm35, %v33, 0.0
    %37 = vadd.xlane.f32.xlu0 %v36
    %v38 = vpop.xlane.xlu0 %37
    %v39 = vsel %vm35, %v34, 0.0
    %40 = vadd.xlane.f32.xlu0 %v39
    %v41 = vpop.xlane.xlu0 %40
    %v42 = vrcp.pop 32.0
    %v43 = vmul.f32 32.0, %v42
    %v44 = vsub.f32 1.0, %v43
    %v45 = vmul.f32 %v42, %v44
    %v46 = vadd.f32 %v42, %v45
    %vm47 = vweird.f32 %v42
    %v48 = vsel %vm47, %v42, %v46
    %v49 = vmul.f32 %v38, %v48
    %v50 = vmul.f32 %v41, %v48
    %v51 = vsub.f32 %v33, %v49
    %v52 = vsub.f32 %v34, %v50
    %v53 = vmul.f32 %v51, %v51
    %v54 = vmul.f32 %v52, %v52
    %v55 = vsel %vm35, %v53, 0.0
    %56 = vadd.xlane.f32.xlu0 %v55
    %v57 = vpop.xlane.xlu0 %56
    %v58 = vsel %vm35, %v54, 0.0
    %59 = vadd.xlane.f32.xlu0 %v58
    %v60 = vpop.xlane.xlu0 %59
    %v61 = vmul.f32 %v57, %v48
    %v62 = vmul.f32 %v60, %v48
    %v63 = vadd.f32 %v61, 1e-12
    %v64 = vadd.f32 %v62, 1e-12
    %v65 = vrsqrt.pop %v63
    %v66 = vmul.f32 %v65, %v63
    %v67 = vmul.f32 %v66, %v65
    %v68 = vmul.f32 0.5, %v67
    %v69 = vsub.f32 1.5, %v68
    %v70 = vmul.f32 %v65, %v69
    %vm71 = vweird.f32 %v63
    %vm72 = vweird.f32 %v65
    %vm73 = vmor %vm71, %vm72
    %v74 = vsel %vm73, %v65, %v70
    %v75 = vrsqrt.pop %v64
    %v76 = vmul.f32 %v75, %v64
    %v77 = vmul.f32 %v76, %v75
    %v78 = vmul.f32 0.5, %v77
    %v79 = vsub.f32 1.5, %v78
    %v80 = vmul.f32 %v75, %v79
    %vm81 = vweird.f32 %v64
    %vm82 = vweird.f32 %v75
    %vm83 = vmor %vm81, %vm82
    %v84 = vsel %vm83, %v75, %v80
    %v85 = vmul.f32 %v51, %v74
    %v86 = vmul.f32 %v52, %v84
    %v87 = vperm.slane %v30, 0
    %v88 = vmul.f32 %v85, %v87
    %v89 = vmul.f32 %v86, %v87
    %v90 = vperm.slane %v30, 1
    %v91 = vadd.f32 %v88, %v90
    %v92 = vadd.f32 %v89, %v90
    %v93 = vld [vmem:[%s3] sm:$0xff]
    %v94 = vld [vmem:[%s3 + $0x8] sm:$0xff]
    %v95 = vld [vmem:[%s3 + $0x10] sm:$0xff]
    %v96 = vld [vmem:[%s3 + $0x18] sm:$0xff]
    %v97 = vld [vmem:[%s4] sm:$0xf]
    %v98 = vld [vmem:[%s4 + $0x4] sm:$0xf]
    %v99 = vld [vmem:[%s4 + $0x8] sm:$0xf]
    %v100 = vld [vmem:[%s4 + $0xc] sm:$0xf]
    %v101 = vld [vmem:[%s4 + $0x10] sm:$0xf]
    %v102 = vld [vmem:[%s4 + $0x14] sm:$0xf]
    %v103 = vld [vmem:[%s4 + $0x18] sm:$0xf]
    %v104 = vld [vmem:[%s4 + $0x1c] sm:$0xf]
    %v105 = vld [vmem:[%s4 + $0x20] sm:$0xf]
    %v106 = vld [vmem:[%s4 + $0x24] sm:$0xf]
    %v107 = vld [vmem:[%s4 + $0x28] sm:$0xf]
    %v108 = vld [vmem:[%s4 + $0x2c] sm:$0xf]
    %v109 = vld [vmem:[%s4 + $0x30] sm:$0xf]
    %v110 = vld [vmem:[%s4 + $0x34] sm:$0xf]
    %v111 = vld [vmem:[%s4 + $0x38] sm:$0xf]
    %v112 = vld [vmem:[%s4 + $0x3c] sm:$0xf]
    %v113 = vld [vmem:[%s4 + $0x40] sm:$0xf]
    %v114 = vld [vmem:[%s4 + $0x44] sm:$0xf]
    %v115 = vld [vmem:[%s4 + $0x48] sm:$0xf]
    %v116 = vld [vmem:[%s4 + $0x4c] sm:$0xf]
    %v117 = vld [vmem:[%s5] sm:$0xff]
    %v118 = vpack.c.bf16 %v92, %v91
    %v119 = vperm.slane %v117, 0
    %v124 = vunpack.c.l.b16 %v93
    %v125 = vunpack.c.l.b16 %v94
    %v126 = vunpack.c.l.b16 %v95
    %v127 = vunpack.c.l.b16 %v96
    %v128 = vpack.c.b16 %v125, %v124
    %v129 = vpack.c.b16 %v127, %v126
    %v133 = vsel %vm35, %v118, 0
    %135 = vmatpush.bf16.msra.mxu0 0
    %136 = vmatpush.bf16.msra.mxu0 0
    %137 = vmatpush.bf16.msra.mxu0 0
    %138 = vmatpush.bf16.msra.mxu0 0
    %139 = vmatpush.bf16.msra.mxu0 0
    %140 = vmatpush.bf16.msra.mxu0 0
    %141 = vmatpush.bf16.msra.mxu0 %v129
    %142 = vmatpush.bf16.msra.mxu0 %v128
    %143 = vmatmul.bf16.gmra.mxu0 %v133
    %v144 = vpop.f32.mrf.mxu0
    %v145 = vadd.f32 %v119, %v144
    %v146 = vpop.f32.mrf.mxu0
    %v147 = vadd.f32 %v119, %v146
    %148 = vdwg.mxu0
    %v149 = vpack.c.bf16 %v147, %v145
    %151 = vrot.lane.b32.xlu0 %v149, 96
    %v152 = vpop.permute.xlu0 %151
    %vm153 = vcmask 130048
    %v155 = vsel %vm153, %v149, 0
    %v158 = vsel %vm153, %v152, 0
    %160 = vmatpush.bf16.xpose.msra.mxu0 0
    %161 = vmatpush.bf16.xpose.msra.mxu0 0
    %162 = vmatpush.bf16.xpose.msra.mxu0 0
    %163 = vmatpush.bf16.xpose.msra.mxu0 0
    %164 = vmatpush.bf16.xpose.msra.mxu0 0
    %165 = vmatpush.bf16.xpose.msra.mxu0 0
    %166 = vmatpush.bf16.xpose.msra.mxu0 0
    %167 = vmatpush.bf16.xpose.msra.mxu0 %v158
    %168 = vmatmul.bf16.gmra.mxu0 %v155
    %v169 = vpop.f32.mrf.mxu0
    %v170 = vadd.f32 %v31, %v169
    %v171 = vpop.f32.mrf.mxu0
    %v172 = vadd.f32 %v32, %v171
    %173 = vdwg.mxu0
    %v174 = vsel %vm153, %v170, -inf
    %175 = vmax.xlane.f32.xlu0 %v174
    %v176 = vpop.xlane.xlu0 %175
    %v177 = vsel %vm153, %v172, -inf
    %178 = vmax.xlane.f32.xlu0 %v177
    %v179 = vpop.xlane.xlu0 %178
    %v180 = vsub.f32 %v170, %v176
    %v181 = vsub.f32 %v172, %v179
    %v182 = vmul.f32 %v180, 1.442695
    %v183 = vpow.pop %v182
    %v184 = vmul.f32 %v181, 1.442695
    %v185 = vpow.pop %v184
    %v186 = vsel %vm153, %v183, 0.0
    %187 = vadd.xlane.f32.xlu0 %v186
    %v188 = vpop.xlane.xlu0 %187
    %v189 = vsel %vm153, %v185, 0.0
    %190 = vadd.xlane.f32.xlu0 %v189
    %v191 = vpop.xlane.xlu0 %190
    %v192 = vrcp.pop %v188
    %v193 = vrcp.pop %v191
    %v194 = vmul.f32 %v183, %v192
    %v195 = vmul.f32 %v185, %v193
    %v196 = vpack.c.bf16 %v195, %v194
    %197 = vrot.lane.b32.xlu0 %v149, 64
    %v198 = vpop.permute.xlu0 %197
    %v201 = vsel %vm153, %v196, 0
    %203 = vmatpush.bf16.msra.mxu0 0
    %204 = vmatpush.bf16.msra.mxu0 0
    %205 = vmatpush.bf16.msra.mxu0 0
    %206 = vmatpush.bf16.msra.mxu0 0
    %207 = vmatpush.bf16.msra.mxu0 0
    %208 = vmatpush.bf16.msra.mxu0 0
    %209 = vmatpush.bf16.msra.mxu0 0
    %210 = vmatpush.bf16.msra.mxu0 %v198
    %211 = vmatmul.bf16.gmra.mxu0 %v201
    %v212 = vpop.f32.mrf.mxu0
    %v213 = vadd.f32 0.0, %v212
    %v214 = vpop.f32.mrf.mxu0
    %v215 = vadd.f32 0.0, %v214
    %216 = vdwg.mxu0
    %v217 = vpack.c.bf16 %v215, %v213
    %218 = vrot.lane.b32.xlu0 %v149, 112
    %v219 = vpop.permute.xlu0 %218
    %220 = vrot.lane.b32.xlu0 %v149, 80
    %v221 = vpop.permute.xlu0 %220
    %v223 = vsel %vm153, %v219, 0
    %v226 = vsel %vm153, %v221, 0
    %228 = vmatpush.bf16.xpose.msra.mxu0 0
    %229 = vmatpush.bf16.xpose.msra.mxu0 0
    %230 = vmatpush.bf16.xpose.msra.mxu0 0
    %231 = vmatpush.bf16.xpose.msra.mxu0 0
    %232 = vmatpush.bf16.xpose.msra.mxu0 0
    %233 = vmatpush.bf16.xpose.msra.mxu0 0
    %234 = vmatpush.bf16.xpose.msra.mxu0 0
    %235 = vmatpush.bf16.xpose.msra.mxu0 %v226
    %236 = vmatmul.bf16.gmra.mxu0 %v223
    %v237 = vpop.f32.mrf.mxu0
    %v238 = vadd.f32 %v31, %v237
    %v239 = vpop.f32.mrf.mxu0
    %v240 = vadd.f32 %v32, %v239
    %241 = vdwg.mxu0
    %v242 = vsel %vm153, %v238, -inf
    %243 = vmax.xlane.f32.xlu0 %v242
    %v244 = vpop.xlane.xlu0 %243
    %v245 = vsel %vm153, %v240, -inf
    %246 = vmax.xlane.f32.xlu0 %v245
    %v247 = vpop.xlane.xlu0 %246
    %v248 = vsub.f32 %v238, %v244
    %v249 = vsub.f32 %v240, %v247
    %v250 = vmul.f32 %v248, 1.442695
    %v251 = vpow.pop %v250
    %v252 = vmul.f32 %v249, 1.442695
    %v253 = vpow.pop %v252
    %v254 = vsel %vm153, %v251, 0.0
    %255 = vadd.xlane.f32.xlu0 %v254
    %v256 = vpop.xlane.xlu0 %255
    %v257 = vsel %vm153, %v253, 0.0
    %258 = vadd.xlane.f32.xlu0 %v257
    %v259 = vpop.xlane.xlu0 %258
    %v260 = vrcp.pop %v256
    %v261 = vrcp.pop %v259
    %v262 = vmul.f32 %v251, %v260
    %v263 = vmul.f32 %v253, %v261
    %v264 = vpack.c.bf16 %v263, %v262
    %265 = vrot.lane.b32.xlu0 %v149, 48
    %v266 = vpop.permute.xlu0 %265
    %v269 = vsel %vm153, %v264, 0
    %271 = vmatpush.bf16.msra.mxu0 0
    %272 = vmatpush.bf16.msra.mxu0 0
    %273 = vmatpush.bf16.msra.mxu0 0
    %274 = vmatpush.bf16.msra.mxu0 0
    %275 = vmatpush.bf16.msra.mxu0 0
    %276 = vmatpush.bf16.msra.mxu0 0
    %277 = vmatpush.bf16.msra.mxu0 0
    %278 = vmatpush.bf16.msra.mxu0 %v266
    %279 = vmatmul.bf16.gmra.mxu0 %v269
    %v280 = vpop.f32.mrf.mxu0
    %v281 = vadd.f32 0.0, %v280
    %v282 = vpop.f32.mrf.mxu0
    %v283 = vadd.f32 0.0, %v282
    %284 = vdwg.mxu0
    %v285 = vpack.c.bf16 %v283, %v281
    %v288 = vunpack.c.l.b16 %v115
    %v289 = vunpack.c.l.b16 %v116
    %v290 = vpack.c.b16 %v289, %v288
    %v293 = vsel %vm153, %v285, 0
    %295 = vmatpush.bf16.msra.mxu0 0
    %296 = vmatpush.bf16.msra.mxu0 0
    %297 = vmatpush.bf16.msra.mxu0 0
    %298 = vmatpush.bf16.msra.mxu0 0
    %299 = vmatpush.bf16.msra.mxu0 0
    %300 = vmatpush.bf16.msra.mxu0 0
    %301 = vmatpush.bf16.msra.mxu0 0
    %302 = vmatpush.bf16.msra.mxu0 %v290
    %303 = vmatmul.bf16.gmra.mxu0 %v293
    %v304 = vpop.f32.mrf.mxu0
    %v305 = vadd.f32 0.0, %v304
    %v306 = vpop.f32.mrf.mxu0
    %v307 = vadd.f32 0.0, %v306
    %308 = vdwg.mxu0
    %v311 = vunpack.c.l.b16 %v113
    %v312 = vunpack.c.l.b16 %v114
    %v313 = vpack.c.b16 %v312, %v311
    %v316 = vsel %vm153, %v217, 0
    %318 = vmatpush.bf16.msra.mxu0 0
    %319 = vmatpush.bf16.msra.mxu0 0
    %320 = vmatpush.bf16.msra.mxu0 0
    %321 = vmatpush.bf16.msra.mxu0 0
    %322 = vmatpush.bf16.msra.mxu0 0
    %323 = vmatpush.bf16.msra.mxu0 0
    %324 = vmatpush.bf16.msra.mxu0 0
    %325 = vmatpush.bf16.msra.mxu0 %v313
    %326 = vmatmul.bf16.gmra.mxu0 %v316
    %v327 = vpop.f32.mrf.mxu0
    %v328 = vadd.f32 %v305, %v327
    %v329 = vpop.f32.mrf.mxu0
    %v330 = vadd.f32 %v307, %v329
    %331 = vdwg.mxu0
    %v332 = vperm.slane %v117, 2
    %v333 = vadd.f32 %v328, %v332
    %v334 = vadd.f32 %v330, %v332
    %v335 = vadd.f32 %v91, %v333
    %v336 = vadd.f32 %v92, %v334
    %v337 = vsel %vm35, %v335, 0.0
    %338 = vadd.xlane.f32.xlu0 %v337
    %v339 = vpop.xlane.xlu0 %338
    %v340 = vsel %vm35, %v336, 0.0
    %341 = vadd.xlane.f32.xlu0 %v340
    %v342 = vpop.xlane.xlu0 %341
    %v343 = vmul.f32 %v339, %v48
    %v344 = vmul.f32 %v342, %v48
    %v345 = vsub.f32 %v335, %v343
    %v346 = vsub.f32 %v336, %v344
    %v347 = vmul.f32 %v345, %v345
    %v348 = vmul.f32 %v346, %v346
    %v349 = vsel %vm35, %v347, 0.0
    %350 = vadd.xlane.f32.xlu0 %v349
    %v351 = vpop.xlane.xlu0 %350
    %v352 = vsel %vm35, %v348, 0.0
    %353 = vadd.xlane.f32.xlu0 %v352
    %v354 = vpop.xlane.xlu0 %353
    %v355 = vmul.f32 %v351, %v48
    %v356 = vmul.f32 %v354, %v48
    %v357 = vadd.f32 %v355, 1e-12
    %v358 = vadd.f32 %v356, 1e-12
    %v359 = vrsqrt.pop %v357
    %v360 = vmul.f32 %v359, %v357
    %v361 = vmul.f32 %v360, %v359
    %v362 = vmul.f32 0.5, %v361
    %v363 = vsub.f32 1.5, %v362
    %v364 = vmul.f32 %v359, %v363
    %vm365 = vweird.f32 %v357
    %vm366 = vweird.f32 %v359
    %vm367 = vmor %vm365, %vm366
    %v368 = vsel %vm367, %v359, %v364
    %v369 = vrsqrt.pop %v358
    %v370 = vmul.f32 %v369, %v358
    %v371 = vmul.f32 %v370, %v369
    %v372 = vmul.f32 0.5, %v371
    %v373 = vsub.f32 1.5, %v372
    %v374 = vmul.f32 %v369, %v373
    %vm375 = vweird.f32 %v358
    %vm376 = vweird.f32 %v369
    %vm377 = vmor %vm375, %vm376
    %v378 = vsel %vm377, %v369, %v374
    %v379 = vmul.f32 %v345, %v368
    %v380 = vmul.f32 %v346, %v378
    %v381 = vperm.slane %v117, 3
    %v382 = vmul.f32 %v379, %v381
    %v383 = vmul.f32 %v380, %v381
    %v384 = vperm.slane %v117, 4
    %v385 = vadd.f32 %v382, %v384
    %v386 = vadd.f32 %v383, %v384
    %v387 = vpack.c.bf16 %v386, %v385
    %v388 = vperm.slane %v117, 1
    %v389 = vunpack.c.h.b16 %v93
    %v390 = vunpack.c.h.b16 %v94
    %v391 = vunpack.c.h.b16 %v95
    %v392 = vunpack.c.h.b16 %v96
    %v393 = vpack.c.b16 %v390, %v389
    %v394 = vpack.c.b16 %v392, %v391
    %v398 = vsel %vm35, %v387, 0
    %400 = vmatpush.bf16.msra.mxu0 0
    %401 = vmatpush.bf16.msra.mxu0 0
    %402 = vmatpush.bf16.msra.mxu0 0
    %403 = vmatpush.bf16.msra.mxu0 0
    %404 = vmatpush.bf16.msra.mxu0 0
    %405 = vmatpush.bf16.msra.mxu0 0
    %406 = vmatpush.bf16.msra.mxu0 %v394
    %407 = vmatpush.bf16.msra.mxu0 %v393
    %408 = vmatmul.bf16.gmra.mxu0 %v398
    %v409 = vpop.f32.mrf.mxu0
    %v410 = vadd.f32 %v388, %v409
    %v411 = vpop.f32.mrf.mxu0
    %v412 = vadd.f32 %v388, %v411
    %413 = vdwg.mxu0
    %v414 = vmul.f32 %v410, %v410
    %v415 = vmul.f32 %v412, %v412
    %v416 = vmul.f32 %v410, %v414
    %v417 = vmul.f32 %v412, %v415
    %v418 = vmul.f32 %v416, 0.044715
    %v419 = vmul.f32 %v417, 0.044715
    %v420 = vadd.f32 %v410, %v418
    %v421 = vadd.f32 %v412, %v419
    %v422 = vmul.f32 %v420, 0.7978846
    %v423 = vmul.f32 %v421, 0.7978846
    %v424 = vtanh.pop %v422
    %v425 = vtanh.pop %v423
    %v426 = vadd.f32 %v424, 1.0
    %v427 = vadd.f32 %v425, 1.0
    %v428 = vmul.f32 %v426, 0.5
    %v429 = vmul.f32 %v427, 0.5
    %v430 = vmul.f32 %v410, %v428
    %v431 = vmul.f32 %v412, %v429
    %v432 = vpack.c.bf16 %v431, %v430
    %v433 = vperm.slane %v117, 5
    %v450 = vunpack.c.l.b16 %v97
    %v451 = vunpack.c.l.b16 %v98
    %v452 = vunpack.c.l.b16 %v99
    %v453 = vunpack.c.l.b16 %v100
    %v454 = vunpack.c.l.b16 %v101
    %v455 = vunpack.c.l.b16 %v102
    %v456 = vunpack.c.l.b16 %v103
    %v457 = vunpack.c.l.b16 %v104
    %v458 = vunpack.c.l.b16 %v105
    %v459 = vunpack.c.l.b16 %v106
    %v460 = vunpack.c.l.b16 %v107
    %v461 = vunpack.c.l.b16 %v108
    %v462 = vunpack.c.l.b16 %v109
    %v463 = vunpack.c.l.b16 %v110
    %v464 = vunpack.c.l.b16 %v111
    %v465 = vunpack.c.l.b16 %v112
    %v466 = vpack.c.b16 %v451, %v450
    %v467 = vpack.c.b16 %v453, %v452
    %v468 = vpack.c.b16 %v455, %v454
    %v469 = vpack.c.b16 %v457, %v456
    %v470 = vpack.c.b16 %v459, %v458
    %v471 = vpack.c.b16 %v461, %v460
    %v472 = vpack.c.b16 %v463, %v462
    %v473 = vpack.c.b16 %v465, %v464
    %482 = vmatpush.bf16.msra.mxu0 %v473
    %483 = vmatpush.bf16.msra.mxu0 %v472
    %484 = vmatpush.bf16.msra.mxu0 %v471
    %485 = vmatpush.bf16.msra.mxu0 %v470
    %486 = vmatpush.bf16.msra.mxu0 %v469
    %487 = vmatpush.bf16.msra.mxu0 %v468
    %488 = vmatpush.bf16.msra.mxu0 %v467
    %489 = vmatpush.bf16.msra.mxu0 %v466
    %490 = vmatmul.bf16.gmra.mxu0 %v432
    %v491 = vpop.f32.mrf.mxu0
    %v492 = vadd.f32 %v433, %v491
    %v493 = vpop.f32.mrf.mxu0
    %v494 = vadd.f32 %v433, %v493
    %495 = vdwg.mxu0
    %v496 = vadd.f32 %v385, %v492
    %v497 = vadd.f32 %v386, %v494
    %v498 = vsel %vm35, %v496, 0.0
    %499 = vadd.xlane.f32.xlu0 %v498
    %v500 = vpop.xlane.xlu0 %499
    %v501 = vsel %vm35, %v497, 0.0
    %502 = vadd.xlane.f32.xlu0 %v501
    %v503 = vpop.xlane.xlu0 %502
    %v504 = vmul.f32 %v500, %v48
    %v505 = vmul.f32 %v503, %v48
    %v506 = vsub.f32 %v496, %v504
    %v507 = vsub.f32 %v497, %v505
    %v508 = vmul.f32 %v506, %v506
    %v509 = vmul.f32 %v507, %v507
    %v510 = vsel %vm35, %v508, 0.0
    %511 = vadd.xlane.f32.xlu0 %v510
    %v512 = vpop.xlane.xlu0 %511
    %v513 = vsel %vm35, %v509, 0.0
    %514 = vadd.xlane.f32.xlu0 %v513
    %v515 = vpop.xlane.xlu0 %514
    %v516 = vmul.f32 %v512, %v48
    %v517 = vmul.f32 %v515, %v48
    %v518 = vadd.f32 %v516, 1e-12
    %v519 = vadd.f32 %v517, 1e-12
    %v520 = vrsqrt.pop %v518
    %v521 = vmul.f32 %v520, %v518
    %v522 = vmul.f32 %v521, %v520
    %v523 = vmul.f32 0.5, %v522
    %v524 = vsub.f32 1.5, %v523
    %v525 = vmul.f32 %v520, %v524
    %vm526 = vweird.f32 %v518
    %vm527 = vweird.f32 %v520
    %vm528 = vmor %vm526, %vm527
    %v529 = vsel %vm528, %v520, %v525
    %v530 = vrsqrt.pop %v519
    %v531 = vmul.f32 %v530, %v519
    %v532 = vmul.f32 %v531, %v530
    %v533 = vmul.f32 0.5, %v532
    %v534 = vsub.f32 1.5, %v533
    %v535 = vmul.f32 %v530, %v534
    %vm536 = vweird.f32 %v519
    %vm537 = vweird.f32 %v530
    %vm538 = vmor %vm536, %vm537
    %v539 = vsel %vm538, %v530, %v535
    %v540 = vmul.f32 %v506, %v529
    %v541 = vmul.f32 %v507, %v539
    %v542 = vperm.slane %v117, 6
    %v543 = vmul.f32 %v540, %v542
    %v544 = vmul.f32 %v541, %v542
    %v545 = vperm.slane %v117, 7
    %v546 = vadd.f32 %v543, %v545
    %v547 = vadd.f32 %v544, %v545
    %s548 = scalar_lea.vmem %s3, 32
    %v549 = vld [vmem:[%s548] sm:$0xff]
    %v550 = vld [vmem:[%s548 + $0x8] sm:$0xff]
    %v551 = vld [vmem:[%s548 + $0x10] sm:$0xff]
    %v552 = vld [vmem:[%s548 + $0x18] sm:$0xff]
    %s553 = scalar_lea.vmem %s4, 80
    %v554 = vld [vmem:[%s553] sm:$0xf]
    %v555 = vld [vmem:[%s553 + $0x4] sm:$0xf]
    %v556 = vld [vmem:[%s553 + $0x8] sm:$0xf]
    %v557 = vld [vmem:[%s553 + $0xc] sm:$0xf]
    %v558 = vld [vmem:[%s553 + $0x10] sm:$0xf]
    %v559 = vld [vmem:[%s553 + $0x14] sm:$0xf]
    %v560 = vld [vmem:[%s553 + $0x18] sm:$0xf]
    %v561 = vld [vmem:[%s553 + $0x1c] sm:$0xf]
    %v562 = vld [vmem:[%s553 + $0x20] sm:$0xf]
    %v563 = vld [vmem:[%s553 + $0x24] sm:$0xf]
    %v564 = vld [vmem:[%s553 + $0x28] sm:$0xf]
    %v565 = vld [vmem:[%s553 + $0x2c] sm:$0xf]
    %v566 = vld [vmem:[%s553 + $0x30] sm:$0xf]
    %v567 = vld [vmem:[%s553 + $0x34] sm:$0xf]
    %v568 = vld [vmem:[%s553 + $0x38] sm:$0xf]
    %v569 = vld [vmem:[%s553 + $0x3c] sm:$0xf]
    %v570 = vld [vmem:[%s553 + $0x40] sm:$0xf]
    %v571 = vld [vmem:[%s553 + $0x44] sm:$0xf]
    %v572 = vld [vmem:[%s553 + $0x48] sm:$0xf]
    %v573 = vld [vmem:[%s553 + $0x4c] sm:$0xf]
    %s574 = scalar_lea.vmem %s5, 8
    %v575 = vld [vmem:[%s574] sm:$0xff]
    %v576 = vpack.c.bf16 %v547, %v546
    %v577 = vperm.slane %v575, 0
    %v582 = vunpack.c.l.b16 %v549
    %v583 = vunpack.c.l.b16 %v550
    %v584 = vunpack.c.l.b16 %v551
    %v585 = vunpack.c.l.b16 %v552
    %v586 = vpack.c.b16 %v583, %v582
    %v587 = vpack.c.b16 %v585, %v584
    %v591 = vsel %vm35, %v576, 0
    %593 = vmatpush.bf16.msra.mxu0 0
    %594 = vmatpush.bf16.msra.mxu0 0
    %595 = vmatpush.bf16.msra.mxu0 0
    %596 = vmatpush.bf16.msra.mxu0 0
    %597 = vmatpush.bf16.msra.mxu0 0
    %598 = vmatpush.bf16.msra.mxu0 0
    %599 = vmatpush.bf16.msra.mxu0 %v587
    %600 = vmatpush.bf16.msra.mxu0 %v586
    %601 = vmatmul.bf16.gmra.mxu0 %v591
    %v602 = vpop.f32.mrf.mxu0
    %v603 = vadd.f32 %v577, %v602
    %v604 = vpop.f32.mrf.mxu0
    %v605 = vadd.f32 %v577, %v604
    %606 = vdwg.mxu0
    %v607 = vpack.c.bf16 %v605, %v603
    %609 = vrot.lane.b32.xlu0 %v607, 96
    %v610 = vpop.permute.xlu0 %609
    %v612 = vsel %vm153, %v607, 0
    %v615 = vsel %vm153, %v610, 0
    %617 = vmatpush.bf16.xpose.msra.mxu0 0
    %618 = vmatpush.bf16.xpose.msra.mxu0 0
    %619 = vmatpush.bf16.xpose.msra.mxu0 0
    %620 = vmatpush.bf16.xpose.msra.mxu0 0
    %621 = vmatpush.bf16.xpose.msra.mxu0 0
    %622 = vmatpush.bf16.xpose.msra.mxu0 0
    %623 = vmatpush.bf16.xpose.msra.mxu0 0
    %624 = vmatpush.bf16.xpose.msra.mxu0 %v615
    %625 = vmatmul.bf16.gmra.mxu0 %v612
    %v626 = vpop.f32.mrf.mxu0
    %v627 = vadd.f32 %v31, %v626
    %v628 = vpop.f32.mrf.mxu0
    %v629 = vadd.f32 %v32, %v628
    %630 = vdwg.mxu0
    %v631 = vsel %vm153, %v627, -inf
    %632 = vmax.xlane.f32.xlu0 %v631
    %v633 = vpop.xlane.xlu0 %632
    %v634 = vsel %vm153, %v629, -inf
    %635 = vmax.xlane.f32.xlu0 %v634
    %v636 = vpop.xlane.xlu0 %635
    %v637 = vsub.f32 %v627, %v633
    %v638 = vsub.f32 %v629, %v636
    %v639 = vmul.f32 %v637, 1.442695
    %v640 = vpow.pop %v639
    %v641 = vmul.f32 %v638, 1.442695
    %v642 = vpow.pop %v641
    %v643 = vsel %vm153, %v640, 0.0
    %644 = vadd.xlane.f32.xlu0 %v643
    %v645 = vpop.xlane.xlu0 %644
    %v646 = vsel %vm153, %v642, 0.0
    %647 = vadd.xlane.f32.xlu0 %v646
    %v648 = vpop.xlane.xlu0 %647
    %v649 = vrcp.pop %v645
    %v650 = vrcp.pop %v648
    %v651 = vmul.f32 %v640, %v649
    %v652 = vmul.f32 %v642, %v650
    %v653 = vpack.c.bf16 %v652, %v651
    %654 = vrot.lane.b32.xlu0 %v607, 64
    %v655 = vpop.permute.xlu0 %654
    %v658 = vsel %vm153, %v653, 0
    %660 = vmatpush.bf16.msra.mxu0 0
    %661 = vmatpush.bf16.msra.mxu0 0
    %662 = vmatpush.bf16.msra.mxu0 0
    %663 = vmatpush.bf16.msra.mxu0 0
    %664 = vmatpush.bf16.msra.mxu0 0
    %665 = vmatpush.bf16.msra.mxu0 0
    %666 = vmatpush.bf16.msra.mxu0 0
    %667 = vmatpush.bf16.msra.mxu0 %v655
    %668 = vmatmul.bf16.gmra.mxu0 %v658
    %v669 = vpop.f32.mrf.mxu0
    %v670 = vadd.f32 0.0, %v669
    %v671 = vpop.f32.mrf.mxu0
    %v672 = vadd.f32 0.0, %v671
    %673 = vdwg.mxu0
    %v674 = vpack.c.bf16 %v672, %v670
    %675 = vrot.lane.b32.xlu0 %v607, 112
    %v676 = vpop.permute.xlu0 %675
    %677 = vrot.lane.b32.xlu0 %v607, 80
    %v678 = vpop.permute.xlu0 %677
    %v680 = vsel %vm153, %v676, 0
    %v683 = vsel %vm153, %v678, 0
    %685 = vmatpush.bf16.xpose.msra.mxu0 0
    %686 = vmatpush.bf16.xpose.msra.mxu0 0
    %687 = vmatpush.bf16.xpose.msra.mxu0 0
    %688 = vmatpush.bf16.xpose.msra.mxu0 0
    %689 = vmatpush.bf16.xpose.msra.mxu0 0
    %690 = vmatpush.bf16.xpose.msra.mxu0 0
    %691 = vmatpush.bf16.xpose.msra.mxu0 0
    %692 = vmatpush.bf16.xpose.msra.mxu0 %v683
    %693 = vmatmul.bf16.gmra.mxu0 %v680
    %v694 = vpop.f32.mrf.mxu0
    %v695 = vadd.f32 %v31, %v694
    %v696 = vpop.f32.mrf.mxu0
    %v697 = vadd.f32 %v32, %v696
    %698 = vdwg.mxu0
    %v699 = vsel %vm153, %v695, -inf
    %700 = vmax.xlane.f32.xlu0 %v699
    %v701 = vpop.xlane.xlu0 %700
    %v702 = vsel %vm153, %v697, -inf
    %703 = vmax.xlane.f32.xlu0 %v702
    %v704 = vpop.xlane.xlu0 %703
    %v705 = vsub.f32 %v695, %v701
    %v706 = vsub.f32 %v697, %v704
    %v707 = vmul.f32 %v705, 1.442695
    %v708 = vpow.pop %v707
    %v709 = vmul.f32 %v706, 1.442695
    %v710 = vpow.pop %v709
    %v711 = vsel %vm153, %v708, 0.0
    %712 = vadd.xlane.f32.xlu0 %v711
    %v713 = vpop.xlane.xlu0 %712
    %v714 = vsel %vm153, %v710, 0.0
    %715 = vadd.xlane.f32.xlu0 %v714
    %v716 = vpop.xlane.xlu0 %715
    %v717 = vrcp.pop %v713
    %v718 = vrcp.pop %v716
    %v719 = vmul.f32 %v708, %v717
    %v720 = vmul.f32 %v710, %v718
    %v721 = vpack.c.bf16 %v720, %v719
    %722 = vrot.lane.b32.xlu0 %v607, 48
    %v723 = vpop.permute.xlu0 %722
    %v726 = vsel %vm153, %v721, 0
    %728 = vmatpush.bf16.msra.mxu0 0
    %729 = vmatpush.bf16.msra.mxu0 0
    %730 = vmatpush.bf16.msra.mxu0 0
    %731 = vmatpush.bf16.msra.mxu0 0
    %732 = vmatpush.bf16.msra.mxu0 0
    %733 = vmatpush.bf16.msra.mxu0 0
    %734 = vmatpush.bf16.msra.mxu0 0
    %735 = vmatpush.bf16.msra.mxu0 %v723
    %736 = vmatmul.bf16.gmra.mxu0 %v726
    %v737 = vpop.f32.mrf.mxu0
    %v738 = vadd.f32 0.0, %v737
    %v739 = vpop.f32.mrf.mxu0
    %v740 = vadd.f32 0.0, %v739
    %741 = vdwg.mxu0
    %v742 = vpack.c.bf16 %v740, %v738
    %v745 = vunpack.c.l.b16 %v572
    %v746 = vunpack.c.l.b16 %v573
    %v747 = vpack.c.b16 %v746, %v745
    %v750 = vsel %vm153, %v742, 0
    %752 = vmatpush.bf16.msra.mxu0 0
    %753 = vmatpush.bf16.msra.mxu0 0
    %754 = vmatpush.bf16.msra.mxu0 0
    %755 = vmatpush.bf16.msra.mxu0 0
    %756 = vmatpush.bf16.msra.mxu0 0
    %757 = vmatpush.bf16.msra.mxu0 0
    %758 = vmatpush.bf16.msra.mxu0 0
    %759 = vmatpush.bf16.msra.mxu0 %v747
    %760 = vmatmul.bf16.gmra.mxu0 %v750
    %v761 = vpop.f32.mrf.mxu0
    %v762 = vadd.f32 0.0, %v761
    %v763 = vpop.f32.mrf.mxu0
    %v764 = vadd.f32 0.0, %v763
    %765 = vdwg.mxu0
    %v768 = vunpack.c.l.b16 %v570
    %v769 = vunpack.c.l.b16 %v571
    %v770 = vpack.c.b16 %v769, %v768
    %v773 = vsel %vm153, %v674, 0
    %775 = vmatpush.bf16.msra.mxu0 0
    %776 = vmatpush.bf16.msra.mxu0 0
    %777 = vmatpush.bf16.msra.mxu0 0
    %778 = vmatpush.bf16.msra.mxu0 0
    %779 = vmatpush.bf16.msra.mxu0 0
    %780 = vmatpush.bf16.msra.mxu0 0
    %781 = vmatpush.bf16.msra.mxu0 0
    %782 = vmatpush.bf16.msra.mxu0 %v770
    %783 = vmatmul.bf16.gmra.mxu0 %v773
    %v784 = vpop.f32.mrf.mxu0
    %v785 = vadd.f32 %v762, %v784
    %v786 = vpop.f32.mrf.mxu0
    %v787 = vadd.f32 %v764, %v786
    %788 = vdwg.mxu0
    %v789 = vperm.slane %v575, 2
    %v790 = vadd.f32 %v785, %v789
    %v791 = vadd.f32 %v787, %v789
    %v792 = vadd.f32 %v546, %v790
    %v793 = vadd.f32 %v547, %v791
    %v794 = vsel %vm35, %v792, 0.0
    %795 = vadd.xlane.f32.xlu0 %v794
    %v796 = vpop.xlane.xlu0 %795
    %v797 = vsel %vm35, %v793, 0.0
    %798 = vadd.xlane.f32.xlu0 %v797
    %v799 = vpop.xlane.xlu0 %798
    %v800 = vmul.f32 %v796, %v48
    %v801 = vmul.f32 %v799, %v48
    %v802 = vsub.f32 %v792, %v800
    %v803 = vsub.f32 %v793, %v801
    %v804 = vmul.f32 %v802, %v802
    %v805 = vmul.f32 %v803, %v803
    %v806 = vsel %vm35, %v804, 0.0
    %807 = vadd.xlane.f32.xlu0 %v806
    %v808 = vpop.xlane.xlu0 %807
    %v809 = vsel %vm35, %v805, 0.0
    %810 = vadd.xlane.f32.xlu0 %v809
    %v811 = vpop.xlane.xlu0 %810
    %v812 = vmul.f32 %v808, %v48
    %v813 = vmul.f32 %v811, %v48
    %v814 = vadd.f32 %v812, 1e-12
    %v815 = vadd.f32 %v813, 1e-12
    %v816 = vrsqrt.pop %v814
    %v817 = vmul.f32 %v816, %v814
    %v818 = vmul.f32 %v817, %v816
    %v819 = vmul.f32 0.5, %v818
    %v820 = vsub.f32 1.5, %v819
    %v821 = vmul.f32 %v816, %v820
    %vm822 = vweird.f32 %v814
    %vm823 = vweird.f32 %v816
    %vm824 = vmor %vm822, %vm823
    %v825 = vsel %vm824, %v816, %v821
    %v826 = vrsqrt.pop %v815
    %v827 = vmul.f32 %v826, %v815
    %v828 = vmul.f32 %v827, %v826
    %v829 = vmul.f32 0.5, %v828
    %v830 = vsub.f32 1.5, %v829
    %v831 = vmul.f32 %v826, %v830
    %vm832 = vweird.f32 %v815
    %vm833 = vweird.f32 %v826
    %vm834 = vmor %vm832, %vm833
    %v835 = vsel %vm834, %v826, %v831
    %v836 = vmul.f32 %v802, %v825
    %v837 = vmul.f32 %v803, %v835
    %v838 = vperm.slane %v575, 3
    %v839 = vmul.f32 %v836, %v838
    %v840 = vmul.f32 %v837, %v838
    %v841 = vperm.slane %v575, 4
    %v842 = vadd.f32 %v839, %v841
    %v843 = vadd.f32 %v840, %v841
    %v844 = vpack.c.bf16 %v843, %v842
    %v845 = vperm.slane %v575, 1
    %v846 = vunpack.c.h.b16 %v549
    %v847 = vunpack.c.h.b16 %v550
    %v848 = vunpack.c.h.b16 %v551
    %v849 = vunpack.c.h.b16 %v552
    %v850 = vpack.c.b16 %v847, %v846
    %v851 = vpack.c.b16 %v849, %v848
    %v855 = vsel %vm35, %v844, 0
    %857 = vmatpush.bf16.msra.mxu0 0
    %858 = vmatpush.bf16.msra.mxu0 0
    %859 = vmatpush.bf16.msra.mxu0 0
    %860 = vmatpush.bf16.msra.mxu0 0
    %861 = vmatpush.bf16.msra.mxu0 0
    %862 = vmatpush.bf16.msra.mxu0 0
    %863 = vmatpush.bf16.msra.mxu0 %v851
    %864 = vmatpush.bf16.msra.mxu0 %v850
    %865 = vmatmul.bf16.gmra.mxu0 %v855
    %v866 = vpop.f32.mrf.mxu0
    %v867 = vadd.f32 %v845, %v866
    %v868 = vpop.f32.mrf.mxu0
    %v869 = vadd.f32 %v845, %v868
    %870 = vdwg.mxu0
    %v871 = vmul.f32 %v867, %v867
    %v872 = vmul.f32 %v869, %v869
    %v873 = vmul.f32 %v867, %v871
    %v874 = vmul.f32 %v869, %v872
    %v875 = vmul.f32 %v873, 0.044715
    %v876 = vmul.f32 %v874, 0.044715
    %v877 = vadd.f32 %v867, %v875
    %v878 = vadd.f32 %v869, %v876
    %v879 = vmul.f32 %v877, 0.7978846
    %v880 = vmul.f32 %v878, 0.7978846
    %v881 = vtanh.pop %v879
    %v882 = vtanh.pop %v880
    %v883 = vadd.f32 %v881, 1.0
    %v884 = vadd.f32 %v882, 1.0
    %v885 = vmul.f32 %v883, 0.5
    %v886 = vmul.f32 %v884, 0.5
    %v887 = vmul.f32 %v867, %v885
    %v888 = vmul.f32 %v869, %v886
    %v889 = vpack.c.bf16 %v888, %v887
    %v890 = vperm.slane %v575, 5
    %v907 = vunpack.c.l.b16 %v554
    %v908 = vunpack.c.l.b16 %v555
    %v909 = vunpack.c.l.b16 %v556
    %v910 = vunpack.c.l.b16 %v557
    %v911 = vunpack.c.l.b16 %v558
    %v912 = vunpack.c.l.b16 %v559
    %v913 = vunpack.c.l.b16 %v560
    %v914 = vunpack.c.l.b16 %v561
    %v915 = vunpack.c.l.b16 %v562
    %v916 = vunpack.c.l.b16 %v563
    %v917 = vunpack.c.l.b16 %v564
    %v918 = vunpack.c.l.b16 %v565
    %v919 = vunpack.c.l.b16 %v566
    %v920 = vunpack.c.l.b16 %v567
    %v921 = vunpack.c.l.b16 %v568
    %v922 = vunpack.c.l.b16 %v569
    %v923 = vpack.c.b16 %v908, %v907
    %v924 = vpack.c.b16 %v910, %v909
    %v925 = vpack.c.b16 %v912, %v911
    %v926 = vpack.c.b16 %v914, %v913
    %v927 = vpack.c.b16 %v916, %v915
    %v928 = vpack.c.b16 %v918, %v917
    %v929 = vpack.c.b16 %v920, %v919
    %v930 = vpack.c.b16 %v922, %v921
    %939 = vmatpush.bf16.msra.mxu0 %v930
    %940 = vmatpush.bf16.msra.mxu0 %v929
    %941 = vmatpush.bf16.msra.mxu0 %v928
    %942 = vmatpush.bf16.msra.mxu0 %v927
    %943 = vmatpush.bf16.msra.mxu0 %v926
    %944 = vmatpush.bf16.msra.mxu0 %v925
    %945 = vmatpush.bf16.msra.mxu0 %v924
    %946 = vmatpush.bf16.msra.mxu0 %v923
    %947 = vmatmul.bf16.gmra.mxu0 %v889
    %v948 = vpop.f32.mrf.mxu0
    %v949 = vadd.f32 %v890, %v948
    %v950 = vpop.f32.mrf.mxu0
    %v951 = vadd.f32 %v890, %v950
    %952 = vdwg.mxu0
    %v953 = vadd.f32 %v842, %v949
    %v954 = vadd.f32 %v843, %v951
    %v955 = vsel %vm35, %v953, 0.0
    %956 = vadd.xlane.f32.xlu0 %v955
    %v957 = vpop.xlane.xlu0 %956
    %v958 = vsel %vm35, %v954, 0.0
    %959 = vadd.xlane.f32.xlu0 %v958
    %v960 = vpop.xlane.xlu0 %959
    %v961 = vmul.f32 %v957, %v48
    %v962 = vmul.f32 %v960, %v48
    %v963 = vsub.f32 %v953, %v961
    %v964 = vsub.f32 %v954, %v962
    %v965 = vmul.f32 %v963, %v963
    %v966 = vmul.f32 %v964, %v964
    %v967 = vsel %vm35, %v965, 0.0
    %968 = vadd.xlane.f32.xlu0 %v967
    %v969 = vpop.xlane.xlu0 %968
    %v970 = vsel %vm35, %v966, 0.0
    %971 = vadd.xlane.f32.xlu0 %v970
    %v972 = vpop.xlane.xlu0 %971
    %v973 = vmul.f32 %v969, %v48
    %v974 = vmul.f32 %v972, %v48
    %v975 = vadd.f32 %v973, 1e-12
    %v976 = vadd.f32 %v974, 1e-12
    %v977 = vrsqrt.pop %v975
    %v978 = vmul.f32 %v977, %v975
    %v979 = vmul.f32 %v978, %v977
    %v980 = vmul.f32 0.5, %v979
    %v981 = vsub.f32 1.5, %v980
    %v982 = vmul.f32 %v977, %v981
    %vm983 = vweird.f32 %v975
    %vm984 = vweird.f32 %v977
    %vm985 = vmor %vm983, %vm984
    %v986 = vsel %vm985, %v977, %v982
    %v987 = vrsqrt.pop %v976
    %v988 = vmul.f32 %v987, %v976
    %v989 = vmul.f32 %v988, %v987
    %v990 = vmul.f32 0.5, %v989
    %v991 = vsub.f32 1.5, %v990
    %v992 = vmul.f32 %v987, %v991
    %vm993 = vweird.f32 %v976
    %vm994 = vweird.f32 %v987
    %vm995 = vmor %vm993, %vm994
    %v996 = vsel %vm995, %v987, %v992
    %v997 = vmul.f32 %v963, %v986
    %v998 = vmul.f32 %v964, %v996
    %v999 = vperm.slane %v575, 6
    %v1000 = vmul.f32 %v997, %v999
    %v1001 = vmul.f32 %v998, %v999
    %v1002 = vperm.slane %v575, 7
    %v1003 = vadd.f32 %v1000, %v1002
    %v1004 = vadd.f32 %v1001, %v1002
    %s1005 = scalar_lea.vmem %s3, 64
    %v1006 = vld [vmem:[%s1005] sm:$0xff]
    %v1007 = vld [vmem:[%s1005 + $0x8] sm:$0xff]
    %v1008 = vld [vmem:[%s1005 + $0x10] sm:$0xff]
    %v1009 = vld [vmem:[%s1005 + $0x18] sm:$0xff]
    %v1010 = vpack.c.bf16 %v1004, %v1003
    %v1011 = vperm.slane %v30, 2
    %v1016 = vunpack.c.l.b16 %v1006
    %v1017 = vunpack.c.l.b16 %v1007
    %v1018 = vunpack.c.l.b16 %v1008
    %v1019 = vunpack.c.l.b16 %v1009
    %v1020 = vpack.c.b16 %v1017, %v1016
    %v1021 = vpack.c.b16 %v1019, %v1018
    %v1025 = vsel %vm35, %v1010, 0
    %1027 = vmatpush.bf16.msra.mxu0 0
    %1028 = vmatpush.bf16.msra.mxu0 0
    %1029 = vmatpush.bf16.msra.mxu0 0
    %1030 = vmatpush.bf16.msra.mxu0 0
    %1031 = vmatpush.bf16.msra.mxu0 0
    %1032 = vmatpush.bf16.msra.mxu0 0
    %1033 = vmatpush.bf16.msra.mxu0 %v1021
    %1034 = vmatpush.bf16.msra.mxu0 %v1020
    %1035 = vmatmul.bf16.gmra.mxu0 %v1025
    %v1036 = vpop.f32.mrf.mxu0
    %v1037 = vadd.f32 %v1011, %v1036
    %v1038 = vpop.f32.mrf.mxu0
    %v1039 = vadd.f32 %v1011, %v1038
    %1040 = vdwg.mxu0
    %1041 = vst [vmem:[%s7] sm:$0xff] %v1037
    %1042 = vst [vmem:[%s7 + $0x8] sm:$0xff] %v1039
    %v1043 = vld [vmem:[%s2] sm:$0xff]
    %v1044 = vld [vmem:[%s2 + $0x8] sm:$0xff]
    %1045 = vmax.xlane.f32.xlu0 %v1037
    %v1046 = vpop.xlane.xlu0 %1045
    %1047 = vmax.xlane.f32.xlu0 %v1039
    %v1048 = vpop.xlane.xlu0 %1047
    %v1049 = vsub.f32 %v1037, %v1046
    %v1050 = vsub.f32 %v1039, %v1048
    %v1051 = vmul.f32 %v1049, 1.442695
    %v1052 = vpow.pop %v1051
    %v1053 = vmul.f32 %v1050, 1.442695
    %v1054 = vpow.pop %v1053
    %1055 = vadd.xlane.f32.xlu0 %v1052
    %v1056 = vpop.xlane.xlu0 %1055
    %1057 = vadd.xlane.f32.xlu0 %v1054
    %v1058 = vpop.xlane.xlu0 %1057
    %v1059 = vlog2.pop %v1056
    %v1060 = vmul.f32 %v1059, 0.6931472
    %v1061 = vlog2.pop %v1058
    %v1062 = vmul.f32 %v1061, 0.6931472
    %v1063 = vadd.f32 %v1060, %v1046
    %v1064 = vadd.f32 %v1062, %v1048
    %v1065 = vsub.f32 %v1037, %v1063
    %v1066 = vsub.f32 %v1039, %v1064
    %vm1067 = vcmp.ne.s32.totalorder %v1043, 4294967196
    %vm1068 = vcmp.ne.s32.totalorder %v1044, 4294967196
    %v1069 = vsel %vm1067, %v1043, 0
    %v1070 = vsel %vm1068, %v1044, 0
    %v1071 = vlaneseq
    %v1072 = vand.u32 %v1071, 127
    %1073 = vset.pattern.permute.xlu0 0
    %1074 = vperm.xlu0 %1073, %v1069
    %v1075 = vpop.permute.xlu0 %1074
    %1076 = vset.pattern.permute.xlu0 0
    %1077 = vperm.xlu0 %1076, %v1070
    %v1078 = vpop.permute.xlu0 %1077
    %vm1079 = vcmp.eq.s32.totalorder %v1072, %v1075
    %vm1080 = vcmp.eq.s32.totalorder %v1072, %v1078
    %v1081 = vsel %vm1079, 1, 0
    %v1082 = vsel %vm1080, 1, 0
    %v1083 = vcvt.s32.f32 %v1081
    %v1084 = vcvt.s32.f32 %v1082
    %v1085 = vmul.f32 %v1065, %v1083
    %v1086 = vmul.f32 %v1066, %v1084
    %1087 = vadd.xlane.f32.xlu0 %v1085
    %v1088 = vpop.xlane.xlu0 %1087
    %1089 = vadd.xlane.f32.xlu0 %v1086
    %v1090 = vpop.xlane.xlu0 %1089
    %v1091 = vsel %vm1067, 1, 0
    %v1092 = vsel %vm1068, 1, 0
    %v1093 = vcvt.s32.f32 %v1091
    %v1094 = vcvt.s32.f32 %v1092
    %v1095 = vsub.f32 0.0, %v1088
    %v1096 = vsub.f32 0.0, %v1090
    %v1097 = vmul.f32 %v1095, %v1093
    %v1098 = vmul.f32 %v1096, %v1094
    %vm1099 = vcmask 7168
    %v1100 = vsel %vm1099, %v1097, 0.0
    %v1101 = vsel %vm1099, %v1098, 0.0
    %v1102 = vadd.f32 %v1100, %v1101
    %v1103 = vrot.slane %v1102, 4
    %v1104 = vadd.f32 %v1102, %v1103
    %v1105 = vrot.slane %v1104, 2
    %v1106 = vadd.f32 %v1104, %v1105
    %v1107 = vrot.slane %v1106, 1
    %v1108 = vadd.f32 %v1106, %v1107
    %v1109 = vsel %vm1099, %v1093, 0.0
    %v1110 = vsel %vm1099, %v1094, 0.0
    %v1111 = vadd.f32 %v1109, %v1110
    %v1112 = vrot.slane %v1111, 4
    %v1113 = vadd.f32 %v1111, %v1112
    %v1114 = vrot.slane %v1113, 2
    %v1115 = vadd.f32 %v1113, %v1114
    %v1116 = vrot.slane %v1115, 1
    %v1117 = vadd.f32 %v1115, %v1116
    %v1118 = vmax.f32 %v1117, 1.0
    %v1119 = vrcp.pop %v1118
    %v1120 = vmul.f32 %v1118, %v1119
    %v1121 = vsub.f32 1.0, %v1120
    %v1122 = vmul.f32 %v1119, %v1121
    %v1123 = vadd.f32 %v1119, %v1122
    %vm1124 = vweird.f32 %v1118
    %vm1125 = vweird.f32 %v1119
    %vm1126 = vmor %vm1124, %vm1125
    %v1127 = vsel %vm1126, %v1119, %v1123
    %v1128 = vand.u32 2147483647, %v1118
    %vm1129 = vcmp.eq.f32.partialorder %v1128, 8.507059e+37
    %v1130 = vand.u32 %v1118, 2147483648
    %v1131 = vor.u32 1.1754944e-38, %v1130
    %v1132 = vsel %vm1129, %v1131, %v1127
    %v1133 = vmul.f32 %v1108, %v1132
    %vm1134 = vcmask 0
    %1135 = vst.msk [vmem:[#allocation2] sm:$0x1] %vm1134, %v1133
    // Predicated region
    $region30: #{ner_forward.1} parent=1 // pred_check
      _
    $region31: #{ner_forward.1} parent=1 // pred_check_branch
      %1137 = sbr.rel (0) target = $region33
    $region32: #{ner_forward.1} parent=1 // pred_region
      _
    $region33: #{ner_forward.1} parent=1 // pred_fallthru
      _
    // Predicated region
    $region34: #{ner_forward.1} parent=1 // pred_check
      _
    $region35: #{ner_forward.1} parent=1 // pred_check_branch
      %1139 = sbr.rel (0) target = $region37
    $region36: #{ner_forward.1} parent=1 // pred_region
      %1141 = vsyncadd [#allocation3], 0
      %s1143 = sshll.u32 [#allocation2], 4
      %s1144 = int_to_ptr.vmem [resolvable:$true] %s1143
      %s1145 = sshll.u32 %s8, 4
      %s1146 = int_to_ptr.hbm [resolvable:$true] %s1145
      %1148 = dma.vmem_to_hbm [thread:$0]  %s1144, 16, %s1146, [#allocation3]
    $region37: #{ner_forward.1} parent=1 // pred_fallthru
      _
    // Predicated region
    $region38: #{ner_forward.1} parent=1 // pred_check
      _
    $region39: #{ner_forward.1} parent=1 // pred_check_branch
      %1150 = sbr.rel (0) target = $region41
    $region40: #{ner_forward.1} parent=1 // pred_region
      _
    $region41: #{ner_forward.1} parent=1 // pred_fallthru
      _
    // Predicated region
    $region42: #{ner_forward.1} parent=1 // pred_check
      _
    $region43: #{ner_forward.1} parent=1 // pred_check_branch
      %1152 = sbr.rel (0) target = $region45
    $region44: #{ner_forward.1} parent=1 // pred_region
      %1154 = dma.done [#allocation3], 16
    $region45: #{ner_forward.1} parent=1 // pred_fallthru
      _
    %1155 = vsyncpa [#allocation3], 1

</llo_original>
